<compile_context>
chip_gen: v5e
topology: v5e:2x2
jax: 0.10.0
libtpu: 0.0.40
codegen_flags: <defaults>
</compile_context>

<pallas_src>
import jax
import jax.numpy as jnp
from jax.experimental import pallas as pl
from jax.experimental.pallas import tpu as pltpu

# ------------------------- small BERT config -------------------------
VOCAB = 128
HIDDEN = 32
N_LAYERS = 2
N_HEADS = 2
HEAD_DIM = HIDDEN // N_HEADS
INTERMEDIATE = 64
MAX_POS = 32
TYPE_VOCAB = 2
LN_EPS = 1e-12

BATCH = 2
SEQ = 8


# ------------------------- fused Pallas kernel -------------------------
def _bert_csc_kernel(
    # activations
    x_ref, mask_ref,
    # embedding LayerNorm
    emb_ln_g_ref, emb_ln_b_ref,
    # stacked encoder-layer weights (leading dim = layer)
    wqkv_ref, bqkv_ref, wo_ref, bo_ref, ln1_g_ref, ln1_b_ref,
    wi_ref, bi_ref, wo2_ref, bo2_ref, ln2_g_ref, ln2_b_ref,
    # heads
    word_emb_ref, mlm_bias_ref,
    pooler_w_ref, pooler_b_ref, dense_w_ref, dense_b_ref,
    cls_w_ref, cls_b_ref,
    # outputs
    out_ref, sent_ref, seq_ref,
    # scratch
    ctx_ref,
):
    f32 = jnp.float32

    def layer_norm(x, g, b):
        mu = jnp.mean(x, axis=-1, keepdims=True)
        var = jnp.mean(jnp.square(x - mu), axis=-1, keepdims=True)
        return (x - mu) * jax.lax.rsqrt(var + LN_EPS) * g + b

    # ---- embeddings LayerNorm (word+pos+type sum comes in pre-gathered) ----
    x = layer_norm(x_ref[...].astype(f32), emb_ln_g_ref[...], emb_ln_b_ref[...])

    # additive attention mask computed in-kernel from the raw (B, S) mask
    mask_add = (1.0 - mask_ref[...].astype(f32)) * -10000.0        # (B, S)
    scale = 1.0 / (HEAD_DIM ** 0.5)

    # ---- encoder layers (static unrolled loop; weights are VMEM-resident) ----
    for l in range(N_LAYERS):
        # fused Q/K/V projection: one MXU pass, N = 3H
        qkv = jnp.dot(x, wqkv_ref[l], preferred_element_type=f32) + bqkv_ref[l]

        # per-(batch, head) attention with static slices; context written to
        # a VMEM scratch slab (never leaves VMEM)
        for b in range(BATCH):
            r0, r1 = b * SEQ, (b + 1) * SEQ
            m_row = mask_add[b:b + 1, :]                           # (1, S)
            for h in range(N_HEADS):
                c0, c1 = h * HEAD_DIM, (h + 1) * HEAD_DIM
                q = qkv[r0:r1, c0:c1]
                k = qkv[r0:r1, HIDDEN + c0:HIDDEN + c1]
                v = qkv[r0:r1, 2 * HIDDEN + c0:2 * HIDDEN + c1]
                # scores: contract last dims (no explicit k transpose)
                s = jax.lax.dot_general(
                    q, k, (((1,), (1,)), ((), ())),
                    preferred_element_type=f32) * scale
                s = s + m_row
                s = s - jnp.max(s, axis=-1, keepdims=True)
                p = jnp.exp(s)
                p = p / jnp.sum(p, axis=-1, keepdims=True)
                ctx_ref[r0:r1, c0:c1] = jnp.dot(p, v, preferred_element_type=f32)

        # attention output projection + residual + LayerNorm (fused)
        attn_out = jnp.dot(ctx_ref[...], wo_ref[l], preferred_element_type=f32) + bo_ref[l]
        x = layer_norm(x + attn_out, ln1_g_ref[l], ln1_b_ref[l])

        # feed-forward + residual + LayerNorm (fused)
        ff = jnp.dot(x, wi_ref[l], preferred_element_type=f32) + bi_ref[l]
        # TODO(synk): HF BERT default is erf-based GELU; tanh approximation used here.
        ff = jax.nn.gelu(ff, approximate=True)
        ff = jnp.dot(ff, wo2_ref[l], preferred_element_type=f32) + bo2_ref[l]
        x = layer_norm(x + ff, ln2_g_ref[l], ln2_b_ref[l])

    last_hidden = x                                                # (B*S, H)

    # ---- tied-embedding MLM head + LogSoftmax (emb stays (V, H), contract last dims) ----
    logits = jax.lax.dot_general(
        last_hidden, word_emb_ref[...], (((1,), (1,)), ((), ())),
        preferred_element_type=f32) + mlm_bias_ref[...]
    z = logits - jnp.max(logits, axis=-1, keepdims=True)
    out_ref[...] = (z - jnp.log(jnp.sum(jnp.exp(z), axis=-1, keepdims=True))
                    ).astype(out_ref.dtype)

    # ---- classifier heads (stay in VMEM; only final results stored) ----
    cls_w = cls_w_ref[...]                                         # (1, H)
    cls_b = cls_b_ref[...]                                         # (1, 1)

    # pooler_output = tanh(W_p @ h[:, 0, :]); computed on the full slab (tiny)
    pooled_all = jnp.tanh(
        jnp.dot(last_hidden, pooler_w_ref[...], preferred_element_type=f32)
        + pooler_b_ref[...])                                       # (B*S, H)
    sent_all = jax.nn.sigmoid(
        jnp.sum(pooled_all * cls_w, axis=-1, keepdims=True) + cls_b)   # (B*S, 1)
    for b in range(BATCH):
        sent_ref[b:b + 1, :] = sent_all[b * SEQ:b * SEQ + 1, :].astype(sent_ref.dtype)

    # seq_cls_out = cls_w(tanh(dense(last_hidden)))
    seq_pooled = jnp.tanh(
        jnp.dot(last_hidden, dense_w_ref[...], preferred_element_type=f32)
        + dense_b_ref[...])                                        # (B*S, H)
    seq_ref[...] = (jnp.sum(seq_pooled * cls_w, axis=-1, keepdims=True)
                    + cls_b).astype(seq_ref.dtype)


def _full_spec(shape):
    nd = len(shape)
    return pl.BlockSpec(shape, lambda i, _nd=nd: (0,) * _nd)


def bert_csc_forward(params, input_ids, input_tyi, input_attn_mask):
    """Equivalent of BertCSC.forward with is_correct_sent=True."""
    B, S = input_ids.shape
    we = params["word_embeddings"]

    # embedding-table gathers kept as plain-JAX glue (data-dependent gather)
    x = (we[input_ids]
         + params["position_embeddings"][jnp.arange(S)][None, :, :]
         + params["token_type_embeddings"][input_tyi])
    x2d = x.reshape(B * S, HIDDEN)
    mask = input_attn_mask.astype(jnp.float32)

    args = [
        x2d, mask,
        params["emb_ln_g"], params["emb_ln_b"],
        params["wqkv"], params["bqkv"], params["wo"], params["bo"],
        params["ln1_g"], params["ln1_b"],
        params["wi"], params["bi"], params["wo2"], params["bo2"],
        params["ln2_g"], params["ln2_b"],
        we, params["mlm_bias"],
        params["pooler_w"], params["pooler_b"],
        params["dense_w"], params["dense_b"],
        params["cls_w"], params["cls_b"],
    ]

    out_shapes = (
        jax.ShapeDtypeStruct((B * S, VOCAB), jnp.float32),
        jax.ShapeDtypeStruct((B, 1), jnp.float32),
        jax.ShapeDtypeStruct((B * S, 1), jnp.float32),
    )
    out_specs = (_full_spec((B * S, VOCAB)),
                 _full_spec((B, 1)),
                 _full_spec((B * S, 1)))

    out2d, sent_cls, seq2d = pl.pallas_call(
        _bert_csc_kernel,
        out_shape=out_shapes,
        grid=(1,),
        in_specs=[_full_spec(a.shape) for a in args],
        out_specs=out_specs,
        scratch_shapes=[pltpu.VMEM((B * S, HIDDEN), jnp.float32)],
        compiler_params=pltpu.CompilerParams(
            dimension_semantics=("arbitrary",)),
    )(*args)

    return out2d.reshape(B, S, VOCAB), sent_cls, seq2d.reshape(B, S, 1)


# ------------------------- params (one-time packed/hoisted prep) -------------------------
def init_params(key):
    keys = iter(jax.random.split(key, 64))

    def w(shape, scale=0.02):
        return scale * jax.random.normal(next(keys), shape, jnp.float32)

    L, H, I = N_LAYERS, HIDDEN, INTERMEDIATE
    return dict(
        word_embeddings=w((VOCAB, HIDDEN)),
        position_embeddings=w((MAX_POS, HIDDEN)),
        token_type_embeddings=w((TYPE_VOCAB, HIDDEN)),
        emb_ln_g=jnp.ones((1, H), jnp.float32),
        emb_ln_b=jnp.zeros((1, H), jnp.float32),
        # per-layer weights stacked along a leading layer axis;
        # Q/K/V fused into one (H, 3H) projection; biases pre-shaped (L,1,N)
        wqkv=w((L, H, 3 * H)), bqkv=jnp.zeros((L, 1, 3 * H), jnp.float32),
        wo=w((L, H, H)), bo=jnp.zeros((L, 1, H), jnp.float32),
        ln1_g=jnp.ones((L, 1, H), jnp.float32), ln1_b=jnp.zeros((L, 1, H), jnp.float32),
        wi=w((L, H, I)), bi=jnp.zeros((L, 1, I), jnp.float32),
        wo2=w((L, I, H)), bo2=jnp.zeros((L, 1, H), jnp.float32),
        ln2_g=jnp.ones((L, 1, H), jnp.float32), ln2_b=jnp.zeros((L, 1, H), jnp.float32),
        # heads
        mlm_bias=jnp.zeros((1, VOCAB), jnp.float32),
        pooler_w=w((H, H)), pooler_b=jnp.zeros((1, H), jnp.float32),
        dense_w=w((H, H)), dense_b=jnp.zeros((1, H), jnp.float32),
        cls_w=w((1, H)), cls_b=jnp.zeros((1, 1), jnp.float32),
    )


if __name__ == "__main__":
    key = jax.random.PRNGKey(0)
    pkey, ikey, tkey = jax.random.split(key, 3)

    params = init_params(pkey)
    input_ids = jax.random.randint(ikey, (BATCH, SEQ), 0, VOCAB, dtype=jnp.int32)
    input_tyi = jax.random.randint(tkey, (BATCH, SEQ), 0, TYPE_VOCAB, dtype=jnp.int32)
    input_attn_mask = jnp.ones((BATCH, SEQ), jnp.int32).at[1, SEQ - 2:].set(0)

    fwd = jax.jit(bert_csc_forward)
    out, sent_cls_out, seq_cls_out = fwd(params, input_ids, input_tyi, input_attn_mask)
    jax.block_until_ready((out, sent_cls_out, seq_cls_out))

    assert out.shape == (BATCH, SEQ, VOCAB)
    assert sent_cls_out.shape == (BATCH, 1)
    assert seq_cls_out.shape == (BATCH, SEQ, 1)
    assert bool(jnp.all(jnp.isfinite(out)))
    print("KERNEL_OK")
</pallas_src>

<mosaic_0001>
module attributes {stable_mosaic.version = 11 : i64} {
  func.func @_bert_csc_kernel(%arg0: i32, %arg1: memref<16x32xf32, #tpu.memory_space<vmem>>, %arg2: memref<2x8xf32, #tpu.memory_space<vmem>>, %arg3: memref<1x32xf32, #tpu.memory_space<vmem>>, %arg4: memref<1x32xf32, #tpu.memory_space<vmem>>, %arg5: memref<2x32x96xf32, #tpu.memory_space<vmem>>, %arg6: memref<2x1x96xf32, #tpu.memory_space<vmem>>, %arg7: memref<2x32x32xf32, #tpu.memory_space<vmem>>, %arg8: memref<2x1x32xf32, #tpu.memory_space<vmem>>, %arg9: memref<2x1x32xf32, #tpu.memory_space<vmem>>, %arg10: memref<2x1x32xf32, #tpu.memory_space<vmem>>, %arg11: memref<2x32x64xf32, #tpu.memory_space<vmem>>, %arg12: memref<2x1x64xf32, #tpu.memory_space<vmem>>, %arg13: memref<2x64x32xf32, #tpu.memory_space<vmem>>, %arg14: memref<2x1x32xf32, #tpu.memory_space<vmem>>, %arg15: memref<2x1x32xf32, #tpu.memory_space<vmem>>, %arg16: memref<2x1x32xf32, #tpu.memory_space<vmem>>, %arg17: memref<128x32xf32, #tpu.memory_space<vmem>>, %arg18: memref<1x128xf32, #tpu.memory_space<vmem>>, %arg19: memref<32x32xf32, #tpu.memory_space<vmem>>, %arg20: memref<1x32xf32, #tpu.memory_space<vmem>>, %arg21: memref<32x32xf32, #tpu.memory_space<vmem>>, %arg22: memref<1x32xf32, #tpu.memory_space<vmem>>, %arg23: memref<1x32xf32, #tpu.memory_space<vmem>>, %arg24: memref<1x1xf32, #tpu.memory_space<vmem>>, %arg25: memref<16x128xf32, #tpu.memory_space<vmem>>, %arg26: memref<2x1xf32, #tpu.memory_space<vmem>>, %arg27: memref<16x1xf32, #tpu.memory_space<vmem>>, %arg28: memref<16x32xf32, #tpu.memory_space<vmem>>) attributes {dimension_semantics = [#tpu.dimension_semantics<arbitrary>], iteration_bounds = array<i64: 1>, scalar_prefetch = 0 : i64, scratch_operands = 1 : i64, tpu.core_type = #tpu.core_type<tc>, window_params = [{pipeline_mode = #tpu.pipeline_mode<synchronous>, transform_indices = @transform_0, window_bounds = array<i64: 16, 32>}, {pipeline_mode = #tpu.pipeline_mode<synchronous>, transform_indices = @transform_1, window_bounds = array<i64: 2, 8>}, {pipeline_mode = #tpu.pipeline_mode<synchronous>, transform_indices = @transform_2, window_bounds = array<i64: 1, 32>}, {pipeline_mode = #tpu.pipeline_mode<synchronous>, transform_indices = @transform_3, window_bounds = array<i64: 1, 32>}, {pipeline_mode = #tpu.pipeline_mode<synchronous>, transform_indices = @transform_4, window_bounds = array<i64: 2, 32, 96>}, {pipeline_mode = #tpu.pipeline_mode<synchronous>, transform_indices = @transform_5, window_bounds = array<i64: 2, 1, 96>}, {pipeline_mode = #tpu.pipeline_mode<synchronous>, transform_indices = @transform_6, window_bounds = array<i64: 2, 32, 32>}, {pipeline_mode = #tpu.pipeline_mode<synchronous>, transform_indices = @transform_7, window_bounds = array<i64: 2, 1, 32>}, {pipeline_mode = #tpu.pipeline_mode<synchronous>, transform_indices = @transform_8, window_bounds = array<i64: 2, 1, 32>}, {pipeline_mode = #tpu.pipeline_mode<synchronous>, transform_indices = @transform_9, window_bounds = array<i64: 2, 1, 32>}, {pipeline_mode = #tpu.pipeline_mode<synchronous>, transform_indices = @transform_10, window_bounds = array<i64: 2, 32, 64>}, {pipeline_mode = #tpu.pipeline_mode<synchronous>, transform_indices = @transform_11, window_bounds = array<i64: 2, 1, 64>}, {pipeline_mode = #tpu.pipeline_mode<synchronous>, transform_indices = @transform_12, window_bounds = array<i64: 2, 64, 32>}, {pipeline_mode = #tpu.pipeline_mode<synchronous>, transform_indices = @transform_13, window_bounds = array<i64: 2, 1, 32>}, {pipeline_mode = #tpu.pipeline_mode<synchronous>, transform_indices = @transform_14, window_bounds = array<i64: 2, 1, 32>}, {pipeline_mode = #tpu.pipeline_mode<synchronous>, transform_indices = @transform_15, window_bounds = array<i64: 2, 1, 32>}, {pipeline_mode = #tpu.pipeline_mode<synchronous>, transform_indices = @transform_16, window_bounds = array<i64: 128, 32>}, {pipeline_mode = #tpu.pipeline_mode<synchronous>, transform_indices = @transform_17, window_bounds = array<i64: 1, 128>}, {pipeline_mode = #tpu.pipeline_mode<synchronous>, transform_indices = @transform_18, window_bounds = array<i64: 32, 32>}, {pipeline_mode = #tpu.pipeline_mode<synchronous>, transform_indices = @transform_19, window_bounds = array<i64: 1, 32>}, {pipeline_mode = #tpu.pipeline_mode<synchronous>, transform_indices = @transform_20, window_bounds = array<i64: 32, 32>}, {pipeline_mode = #tpu.pipeline_mode<synchronous>, transform_indices = @transform_21, window_bounds = array<i64: 1, 32>}, {pipeline_mode = #tpu.pipeline_mode<synchronous>, transform_indices = @transform_22, window_bounds = array<i64: 1, 32>}, {pipeline_mode = #tpu.pipeline_mode<synchronous>, transform_indices = @transform_23, window_bounds = array<i64: 1, 1>}, {pipeline_mode = #tpu.pipeline_mode<synchronous>, transform_indices = @transform_24, window_bounds = array<i64: 16, 128>}, {pipeline_mode = #tpu.pipeline_mode<synchronous>, transform_indices = @transform_25, window_bounds = array<i64: 2, 1>}, {pipeline_mode = #tpu.pipeline_mode<synchronous>, transform_indices = @transform_26, window_bounds = array<i64: 16, 1>}]} {
    %c0 = arith.constant 0 : index
    %c0_0 = arith.constant 0 : index
    %0 = vector.load %arg1[%c0, %c0_0] : memref<16x32xf32, #tpu.memory_space<vmem>>, vector<16x32xf32>
    %c0_1 = arith.constant 0 : index
    %c0_2 = arith.constant 0 : index
    %1 = vector.load %arg3[%c0_1, %c0_2] : memref<1x32xf32, #tpu.memory_space<vmem>>, vector<1x32xf32>
    %c0_3 = arith.constant 0 : index
    %c0_4 = arith.constant 0 : index
    %2 = vector.load %arg4[%c0_3, %c0_4] : memref<1x32xf32, #tpu.memory_space<vmem>>, vector<1x32xf32>
    %cst = arith.constant dense<0.000000e+00> : vector<16xf32>
    %3 = vector.multi_reduction <add>, %0, %cst [1] : vector<16x32xf32> to vector<16xf32>
    %4 = vector.shape_cast %3 : vector<16xf32> to vector<16x1xf32>
    %cst_5 = arith.constant 3.200000e+01 : f32
    %5 = vector.broadcast %cst_5 : f32 to vector<16x1xf32>
    %6 = arith.divf %4, %5 : vector<16x1xf32>
    %7 = vector.broadcast %6 : vector<16x1xf32> to vector<16x32xf32>
    %8 = arith.subf %0, %7 : vector<16x32xf32>
    %9 = arith.mulf %8, %8 : vector<16x32xf32>
    %cst_6 = arith.constant dense<0.000000e+00> : vector<16xf32>
    %10 = vector.multi_reduction <add>, %9, %cst_6 [1] : vector<16x32xf32> to vector<16xf32>
    %11 = vector.shape_cast %10 : vector<16xf32> to vector<16x1xf32>
    %cst_7 = arith.constant 3.200000e+01 : f32
    %12 = vector.broadcast %cst_7 : f32 to vector<16x1xf32>
    %13 = arith.divf %11, %12 : vector<16x1xf32>
    %14 = vector.broadcast %6 : vector<16x1xf32> to vector<16x32xf32>
    %15 = arith.subf %0, %14 : vector<16x32xf32>
    %cst_8 = arith.constant 9.99999996E-13 : f32
    %16 = vector.broadcast %cst_8 : f32 to vector<16x1xf32>
    %17 = arith.addf %13, %16 : vector<16x1xf32>
    %18 = math.rsqrt %17 : vector<16x1xf32>
    %19 = vector.broadcast %18 : vector<16x1xf32> to vector<16x32xf32>
    %20 = arith.mulf %15, %19 : vector<16x32xf32>
    %21 = vector.broadcast %1 : vector<1x32xf32> to vector<16x32xf32>
    %22 = arith.mulf %20, %21 : vector<16x32xf32>
    %23 = vector.broadcast %2 : vector<1x32xf32> to vector<16x32xf32>
    %24 = arith.addf %22, %23 : vector<16x32xf32>
    %c0_9 = arith.constant 0 : index
    %c0_10 = arith.constant 0 : index
    %25 = vector.load %arg2[%c0_9, %c0_10] : memref<2x8xf32, #tpu.memory_space<vmem>>, vector<2x8xf32>
    %cst_11 = arith.constant 1.000000e+00 : f32
    %26 = vector.broadcast %cst_11 : f32 to vector<2x8xf32>
    %27 = arith.subf %26, %25 : vector<2x8xf32>
    %cst_12 = arith.constant -1.000000e+04 : f32
    %28 = vector.broadcast %cst_12 : f32 to vector<2x8xf32>
    %29 = arith.mulf %27, %28 : vector<2x8xf32>
    %c0_13 = arith.constant 0 : index
    %c0_14 = arith.constant 0 : index
    %c0_15 = arith.constant 0 : index
    %30 = vector.load %arg5[%c0_13, %c0_14, %c0_15] : memref<2x32x96xf32, #tpu.memory_space<vmem>>, vector<1x32x96xf32>
    %31 = vector.shape_cast %30 : vector<1x32x96xf32> to vector<32x96xf32>
    %cst_16 = arith.constant dense<0.000000e+00> : vector<16x96xf32>
    %32 = tpu.matmul %24, %31, %cst_16 {dimension_numbers = #tpu.dot_dimension_numbers<[1], [0], [0], [1], [0, 0, 1, 1], [], []>} : vector<16x32xf32>, vector<32x96xf32>, vector<16x96xf32> -> vector<16x96xf32>
    %c0_17 = arith.constant 0 : index
    %c0_18 = arith.constant 0 : index
    %c0_19 = arith.constant 0 : index
    %33 = vector.load %arg6[%c0_17, %c0_18, %c0_19] : memref<2x1x96xf32, #tpu.memory_space<vmem>>, vector<1x1x96xf32>
    %34 = vector.shape_cast %33 : vector<1x1x96xf32> to vector<1x96xf32>
    %35 = vector.broadcast %34 : vector<1x96xf32> to vector<16x96xf32>
    %36 = arith.addf %32, %35 : vector<16x96xf32>
    %37 = vector.extract_strided_slice %29 {offsets = [0, 0], sizes = [1, 8], strides = [1, 1]} : vector<2x8xf32> to vector<1x8xf32>
    %38 = vector.extract_strided_slice %36 {offsets = [0, 0], sizes = [8, 16], strides = [1, 1]} : vector<16x96xf32> to vector<8x16xf32>
    %39 = vector.extract_strided_slice %36 {offsets = [0, 32], sizes = [8, 16], strides = [1, 1]} : vector<16x96xf32> to vector<8x16xf32>
    %40 = vector.extract_strided_slice %36 {offsets = [0, 64], sizes = [8, 16], strides = [1, 1]} : vector<16x96xf32> to vector<8x16xf32>
    %cst_20 = arith.constant dense<0.000000e+00> : vector<8x8xf32>
    %41 = tpu.matmul %38, %39, %cst_20 {dimension_numbers = #tpu.dot_dimension_numbers<[1], [1], [0], [0], [0, 0, 1, 0], [], []>} : vector<8x16xf32>, vector<8x16xf32>, vector<8x8xf32> -> vector<8x8xf32>
    %cst_21 = arith.constant 2.500000e-01 : f32
    %42 = vector.broadcast %cst_21 : f32 to vector<8x8xf32>
    %43 = arith.mulf %41, %42 : vector<8x8xf32>
    %44 = vector.broadcast %37 : vector<1x8xf32> to vector<8x8xf32>
    %45 = arith.addf %43, %44 : vector<8x8xf32>
    %cst_22 = arith.constant dense<0xFF800000> : vector<8xf32>
    %46 = vector.multi_reduction <maximumf>, %45, %cst_22 [1] : vector<8x8xf32> to vector<8xf32>
    %47 = vector.shape_cast %46 : vector<8xf32> to vector<8x1xf32>
    %48 = vector.broadcast %47 : vector<8x1xf32> to vector<8x8xf32>
    %49 = arith.subf %45, %48 : vector<8x8xf32>
    %50 = math.exp %49 : vector<8x8xf32>
    %cst_23 = arith.constant dense<0.000000e+00> : vector<8xf32>
    %51 = vector.multi_reduction <add>, %50, %cst_23 [1] : vector<8x8xf32> to vector<8xf32>
    %52 = vector.shape_cast %51 : vector<8xf32> to vector<8x1xf32>
    %53 = vector.broadcast %52 : vector<8x1xf32> to vector<8x8xf32>
    %54 = arith.divf %50, %53 : vector<8x8xf32>
    %cst_24 = arith.constant dense<0.000000e+00> : vector<8x16xf32>
    %55 = tpu.matmul %54, %40, %cst_24 {dimension_numbers = #tpu.dot_dimension_numbers<[1], [0], [0], [1], [0, 0, 1, 1], [], []>} : vector<8x8xf32>, vector<8x16xf32>, vector<8x16xf32> -> vector<8x16xf32>
    %c0_25 = arith.constant 0 : index
    %c0_26 = arith.constant 0 : index
    %56 = vector.load %arg28[%c0_25, %c0_26] : memref<16x32xf32, #tpu.memory_space<vmem>>, vector<8x16xf32>
    tpu.vector_store %arg28[%c0_25, %c0_26], %55 {strides = array<i32>} : memref<16x32xf32, #tpu.memory_space<vmem>>, vector<8x16xf32>,
    %57 = vector.extract_strided_slice %36 {offsets = [0, 16], sizes = [8, 16], strides = [1, 1]} : vector<16x96xf32> to vector<8x16xf32>
    %58 = vector.extract_strided_slice %36 {offsets = [0, 48], sizes = [8, 16], strides = [1, 1]} : vector<16x96xf32> to vector<8x16xf32>
    %59 = vector.extract_strided_slice %36 {offsets = [0, 80], sizes = [8, 16], strides = [1, 1]} : vector<16x96xf32> to vector<8x16xf32>
    %cst_27 = arith.constant dense<0.000000e+00> : vector<8x8xf32>
    %60 = tpu.matmul %57, %58, %cst_27 {dimension_numbers = #tpu.dot_dimension_numbers<[1], [1], [0], [0], [0, 0, 1, 0], [], []>} : vector<8x16xf32>, vector<8x16xf32>, vector<8x8xf32> -> vector<8x8xf32>
    %cst_28 = arith.constant 2.500000e-01 : f32
    %61 = vector.broadcast %cst_28 : f32 to vector<8x8xf32>
    %62 = arith.mulf %60, %61 : vector<8x8xf32>
    %63 = vector.broadcast %37 : vector<1x8xf32> to vector<8x8xf32>
    %64 = arith.addf %62, %63 : vector<8x8xf32>
    %cst_29 = arith.constant dense<0xFF800000> : vector<8xf32>
    %65 = vector.multi_reduction <maximumf>, %64, %cst_29 [1] : vector<8x8xf32> to vector<8xf32>
    %66 = vector.shape_cast %65 : vector<8xf32> to vector<8x1xf32>
    %67 = vector.broadcast %66 : vector<8x1xf32> to vector<8x8xf32>
    %68 = arith.subf %64, %67 : vector<8x8xf32>
    %69 = math.exp %68 : vector<8x8xf32>
    %cst_30 = arith.constant dense<0.000000e+00> : vector<8xf32>
    %70 = vector.multi_reduction <add>, %69, %cst_30 [1] : vector<8x8xf32> to vector<8xf32>
    %71 = vector.shape_cast %70 : vector<8xf32> to vector<8x1xf32>
    %72 = vector.broadcast %71 : vector<8x1xf32> to vector<8x8xf32>
    %73 = arith.divf %69, %72 : vector<8x8xf32>
    %cst_31 = arith.constant dense<0.000000e+00> : vector<8x16xf32>
    %74 = tpu.matmul %73, %59, %cst_31 {dimension_numbers = #tpu.dot_dimension_numbers<[1], [0], [0], [1], [0, 0, 1, 1], [], []>} : vector<8x8xf32>, vector<8x16xf32>, vector<8x16xf32> -> vector<8x16xf32>
    %c0_32 = arith.constant 0 : index
    %c16 = arith.constant 16 : index
    %75 = vector.load %arg28[%c0_32, %c16] : memref<16x32xf32, #tpu.memory_space<vmem>>, vector<8x16xf32>
    tpu.vector_store %arg28[%c0_32, %c16], %74 {strides = array<i32>} : memref<16x32xf32, #tpu.memory_space<vmem>>, vector<8x16xf32>,
    %76 = vector.extract_strided_slice %29 {offsets = [1, 0], sizes = [1, 8], strides = [1, 1]} : vector<2x8xf32> to vector<1x8xf32>
    %77 = vector.extract_strided_slice %36 {offsets = [8, 0], sizes = [8, 16], strides = [1, 1]} : vector<16x96xf32> to vector<8x16xf32>
    %78 = vector.extract_strided_slice %36 {offsets = [8, 32], sizes = [8, 16], strides = [1, 1]} : vector<16x96xf32> to vector<8x16xf32>
    %79 = vector.extract_strided_slice %36 {offsets = [8, 64], sizes = [8, 16], strides = [1, 1]} : vector<16x96xf32> to vector<8x16xf32>
    %cst_33 = arith.constant dense<0.000000e+00> : vector<8x8xf32>
    %80 = tpu.matmul %77, %78, %cst_33 {dimension_numbers = #tpu.dot_dimension_numbers<[1], [1], [0], [0], [0, 0, 1, 0], [], []>} : vector<8x16xf32>, vector<8x16xf32>, vector<8x8xf32> -> vector<8x8xf32>
    %cst_34 = arith.constant 2.500000e-01 : f32
    %81 = vector.broadcast %cst_34 : f32 to vector<8x8xf32>
    %82 = arith.mulf %80, %81 : vector<8x8xf32>
    %83 = vector.broadcast %76 : vector<1x8xf32> to vector<8x8xf32>
    %84 = arith.addf %82, %83 : vector<8x8xf32>
    %cst_35 = arith.constant dense<0xFF800000> : vector<8xf32>
    %85 = vector.multi_reduction <maximumf>, %84, %cst_35 [1] : vector<8x8xf32> to vector<8xf32>
    %86 = vector.shape_cast %85 : vector<8xf32> to vector<8x1xf32>
    %87 = vector.broadcast %86 : vector<8x1xf32> to vector<8x8xf32>
    %88 = arith.subf %84, %87 : vector<8x8xf32>
    %89 = math.exp %88 : vector<8x8xf32>
    %cst_36 = arith.constant dense<0.000000e+00> : vector<8xf32>
    %90 = vector.multi_reduction <add>, %89, %cst_36 [1] : vector<8x8xf32> to vector<8xf32>
    %91 = vector.shape_cast %90 : vector<8xf32> to vector<8x1xf32>
    %92 = vector.broadcast %91 : vector<8x1xf32> to vector<8x8xf32>
    %93 = arith.divf %89, %92 : vector<8x8xf32>
    %cst_37 = arith.constant dense<0.000000e+00> : vector<8x16xf32>
    %94 = tpu.matmul %93, %79, %cst_37 {dimension_numbers = #tpu.dot_dimension_numbers<[1], [0], [0], [1], [0, 0, 1, 1], [], []>} : vector<8x8xf32>, vector<8x16xf32>, vector<8x16xf32> -> vector<8x16xf32>
    %c8 = arith.constant 8 : index
    %c0_38 = arith.constant 0 : index
    %95 = vector.load %arg28[%c8, %c0_38] : memref<16x32xf32, #tpu.memory_space<vmem>>, vector<8x16xf32>
    tpu.vector_store %arg28[%c8, %c0_38], %94 {strides = array<i32>} : memref<16x32xf32, #tpu.memory_space<vmem>>, vector<8x16xf32>,
    %96 = vector.extract_strided_slice %36 {offsets = [8, 16], sizes = [8, 16], strides = [1, 1]} : vector<16x96xf32> to vector<8x16xf32>
    %97 = vector.extract_strided_slice %36 {offsets = [8, 48], sizes = [8, 16], strides = [1, 1]} : vector<16x96xf32> to vector<8x16xf32>
    %98 = vector.extract_strided_slice %36 {offsets = [8, 80], sizes = [8, 16], strides = [1, 1]} : vector<16x96xf32> to vector<8x16xf32>
    %cst_39 = arith.constant dense<0.000000e+00> : vector<8x8xf32>
    %99 = tpu.matmul %96, %97, %cst_39 {dimension_numbers = #tpu.dot_dimension_numbers<[1], [1], [0], [0], [0, 0, 1, 0], [], []>} : vector<8x16xf32>, vector<8x16xf32>, vector<8x8xf32> -> vector<8x8xf32>
    %cst_40 = arith.constant 2.500000e-01 : f32
    %100 = vector.broadcast %cst_40 : f32 to vector<8x8xf32>
    %101 = arith.mulf %99, %100 : vector<8x8xf32>
    %102 = vector.broadcast %76 : vector<1x8xf32> to vector<8x8xf32>
    %103 = arith.addf %101, %102 : vector<8x8xf32>
    %cst_41 = arith.constant dense<0xFF800000> : vector<8xf32>
    %104 = vector.multi_reduction <maximumf>, %103, %cst_41 [1] : vector<8x8xf32> to vector<8xf32>
    %105 = vector.shape_cast %104 : vector<8xf32> to vector<8x1xf32>
    %106 = vector.broadcast %105 : vector<8x1xf32> to vector<8x8xf32>
    %107 = arith.subf %103, %106 : vector<8x8xf32>
    %108 = math.exp %107 : vector<8x8xf32>
    %cst_42 = arith.constant dense<0.000000e+00> : vector<8xf32>
    %109 = vector.multi_reduction <add>, %108, %cst_42 [1] : vector<8x8xf32> to vector<8xf32>
    %110 = vector.shape_cast %109 : vector<8xf32> to vector<8x1xf32>
    %111 = vector.broadcast %110 : vector<8x1xf32> to vector<8x8xf32>
    %112 = arith.divf %108, %111 : vector<8x8xf32>
    %cst_43 = arith.constant dense<0.000000e+00> : vector<8x16xf32>
    %113 = tpu.matmul %112, %98, %cst_43 {dimension_numbers = #tpu.dot_dimension_numbers<[1], [0], [0], [1], [0, 0, 1, 1], [], []>} : vector<8x8xf32>, vector<8x16xf32>, vector<8x16xf32> -> vector<8x16xf32>
    %c8_44 = arith.constant 8 : index
    %c16_45 = arith.constant 16 : index
    %114 = vector.load %arg28[%c8_44, %c16_45] : memref<16x32xf32, #tpu.memory_space<vmem>>, vector<8x16xf32>
    tpu.vector_store %arg28[%c8_44, %c16_45], %113 {strides = array<i32>} : memref<16x32xf32, #tpu.memory_space<vmem>>, vector<8x16xf32>,
    %c0_46 = arith.constant 0 : index
    %c0_47 = arith.constant 0 : index
    %115 = vector.load %arg28[%c0_46, %c0_47] : memref<16x32xf32, #tpu.memory_space<vmem>>, vector<16x32xf32>
    %c0_48 = arith.constant 0 : index
    %c0_49 = arith.constant 0 : index
    %c0_50 = arith.constant 0 : index
    %116 = vector.load %arg7[%c0_48, %c0_49, %c0_50] : memref<2x32x32xf32, #tpu.memory_space<vmem>>, vector<1x32x32xf32>
    %117 = vector.shape_cast %116 : vector<1x32x32xf32> to vector<32x32xf32>
    %cst_51 = arith.constant dense<0.000000e+00> : vector<16x32xf32>
    %118 = tpu.matmul %115, %117, %cst_51 {dimension_numbers = #tpu.dot_dimension_numbers<[1], [0], [0], [1], [0, 0, 1, 1], [], []>} : vector<16x32xf32>, vector<32x32xf32>, vector<16x32xf32> -> vector<16x32xf32>
    %c0_52 = arith.constant 0 : index
    %c0_53 = arith.constant 0 : index
    %c0_54 = arith.constant 0 : index
    %119 = vector.load %arg8[%c0_52, %c0_53, %c0_54] : memref<2x1x32xf32, #tpu.memory_space<vmem>>, vector<1x1x32xf32>
    %120 = vector.shape_cast %119 : vector<1x1x32xf32> to vector<1x32xf32>
    %121 = vector.broadcast %120 : vector<1x32xf32> to vector<16x32xf32>
    %122 = arith.addf %118, %121 : vector<16x32xf32>
    %123 = arith.addf %24, %122 : vector<16x32xf32>
    %c0_55 = arith.constant 0 : index
    %c0_56 = arith.constant 0 : index
    %c0_57 = arith.constant 0 : index
    %124 = vector.load %arg9[%c0_55, %c0_56, %c0_57] : memref<2x1x32xf32, #tpu.memory_space<vmem>>, vector<1x1x32xf32>
    %125 = vector.shape_cast %124 : vector<1x1x32xf32> to vector<1x32xf32>
    %c0_58 = arith.constant 0 : index
    %c0_59 = arith.constant 0 : index
    %c0_60 = arith.constant 0 : index
    %126 = vector.load %arg10[%c0_58, %c0_59, %c0_60] : memref<2x1x32xf32, #tpu.memory_space<vmem>>, vector<1x1x32xf32>
    %127 = vector.shape_cast %126 : vector<1x1x32xf32> to vector<1x32xf32>
    %cst_61 = arith.constant dense<0.000000e+00> : vector<16xf32>
    %128 = vector.multi_reduction <add>, %123, %cst_61 [1] : vector<16x32xf32> to vector<16xf32>
    %129 = vector.shape_cast %128 : vector<16xf32> to vector<16x1xf32>
    %cst_62 = arith.constant 3.200000e+01 : f32
    %130 = vector.broadcast %cst_62 : f32 to vector<16x1xf32>
    %131 = arith.divf %129, %130 : vector<16x1xf32>
    %132 = vector.broadcast %131 : vector<16x1xf32> to vector<16x32xf32>
    %133 = arith.subf %123, %132 : vector<16x32xf32>
    %134 = arith.mulf %133, %133 : vector<16x32xf32>
    %cst_63 = arith.constant dense<0.000000e+00> : vector<16xf32>
    %135 = vector.multi_reduction <add>, %134, %cst_63 [1] : vector<16x32xf32> to vector<16xf32>
    %136 = vector.shape_cast %135 : vector<16xf32> to vector<16x1xf32>
    %cst_64 = arith.constant 3.200000e+01 : f32
    %137 = vector.broadcast %cst_64 : f32 to vector<16x1xf32>
    %138 = arith.divf %136, %137 : vector<16x1xf32>
    %139 = vector.broadcast %131 : vector<16x1xf32> to vector<16x32xf32>
    %140 = arith.subf %123, %139 : vector<16x32xf32>
    %cst_65 = arith.constant 9.99999996E-13 : f32
    %141 = vector.broadcast %cst_65 : f32 to vector<16x1xf32>
    %142 = arith.addf %138, %141 : vector<16x1xf32>
    %143 = math.rsqrt %142 : vector<16x1xf32>
    %144 = vector.broadcast %143 : vector<16x1xf32> to vector<16x32xf32>
    %145 = arith.mulf %140, %144 : vector<16x32xf32>
    %146 = vector.broadcast %125 : vector<1x32xf32> to vector<16x32xf32>
    %147 = arith.mulf %145, %146 : vector<16x32xf32>
    %148 = vector.broadcast %127 : vector<1x32xf32> to vector<16x32xf32>
    %149 = arith.addf %147, %148 : vector<16x32xf32>
    %c0_66 = arith.constant 0 : index
    %c0_67 = arith.constant 0 : index
    %c0_68 = arith.constant 0 : index
    %150 = vector.load %arg11[%c0_66, %c0_67, %c0_68] : memref<2x32x64xf32, #tpu.memory_space<vmem>>, vector<1x32x64xf32>
    %151 = vector.shape_cast %150 : vector<1x32x64xf32> to vector<32x64xf32>
    %cst_69 = arith.constant dense<0.000000e+00> : vector<16x64xf32>
    %152 = tpu.matmul %149, %151, %cst_69 {dimension_numbers = #tpu.dot_dimension_numbers<[1], [0], [0], [1], [0, 0, 1, 1], [], []>} : vector<16x32xf32>, vector<32x64xf32>, vector<16x64xf32> -> vector<16x64xf32>
    %c0_70 = arith.constant 0 : index
    %c0_71 = arith.constant 0 : index
    %c0_72 = arith.constant 0 : index
    %153 = vector.load %arg12[%c0_70, %c0_71, %c0_72] : memref<2x1x64xf32, #tpu.memory_space<vmem>>, vector<1x1x64xf32>
    %154 = vector.shape_cast %153 : vector<1x1x64xf32> to vector<1x64xf32>
    %155 = vector.broadcast %154 : vector<1x64xf32> to vector<16x64xf32>
    %156 = arith.addf %152, %155 : vector<16x64xf32>
    %157 = arith.mulf %156, %156 : vector<16x64xf32>
    %158 = arith.mulf %156, %157 : vector<16x64xf32>
    %cst_73 = arith.constant 4.471500e-02 : f32
    %159 = vector.broadcast %cst_73 : f32 to vector<16x64xf32>
    %160 = arith.mulf %159, %158 : vector<16x64xf32>
    %161 = arith.addf %156, %160 : vector<16x64xf32>
    %cst_74 = arith.constant 0.797884583 : f32
    %162 = vector.broadcast %cst_74 : f32 to vector<16x64xf32>
    %163 = arith.mulf %162, %161 : vector<16x64xf32>
    %164 = math.tanh %163 : vector<16x64xf32>
    %cst_75 = arith.constant 1.000000e+00 : f32
    %165 = vector.broadcast %cst_75 : f32 to vector<16x64xf32>
    %166 = arith.addf %165, %164 : vector<16x64xf32>
    %cst_76 = arith.constant 5.000000e-01 : f32
    %167 = vector.broadcast %cst_76 : f32 to vector<16x64xf32>
    %168 = arith.mulf %167, %166 : vector<16x64xf32>
    %169 = arith.mulf %156, %168 : vector<16x64xf32>
    %c0_77 = arith.constant 0 : index
    %c0_78 = arith.constant 0 : index
    %c0_79 = arith.constant 0 : index
    %170 = vector.load %arg13[%c0_77, %c0_78, %c0_79] : memref<2x64x32xf32, #tpu.memory_space<vmem>>, vector<1x64x32xf32>
    %171 = vector.shape_cast %170 : vector<1x64x32xf32> to vector<64x32xf32>
    %cst_80 = arith.constant dense<0.000000e+00> : vector<16x32xf32>
    %172 = tpu.matmul %169, %171, %cst_80 {dimension_numbers = #tpu.dot_dimension_numbers<[1], [0], [0], [1], [0, 0, 1, 1], [], []>} : vector<16x64xf32>, vector<64x32xf32>, vector<16x32xf32> -> vector<16x32xf32>
    %c0_81 = arith.constant 0 : index
    %c0_82 = arith.constant 0 : index
    %c0_83 = arith.constant 0 : index
    %173 = vector.load %arg14[%c0_81, %c0_82, %c0_83] : memref<2x1x32xf32, #tpu.memory_space<vmem>>, vector<1x1x32xf32>
    %174 = vector.shape_cast %173 : vector<1x1x32xf32> to vector<1x32xf32>
    %175 = vector.broadcast %174 : vector<1x32xf32> to vector<16x32xf32>
    %176 = arith.addf %172, %175 : vector<16x32xf32>
    %177 = arith.addf %149, %176 : vector<16x32xf32>
    %c0_84 = arith.constant 0 : index
    %c0_85 = arith.constant 0 : index
    %c0_86 = arith.constant 0 : index
    %178 = vector.load %arg15[%c0_84, %c0_85, %c0_86] : memref<2x1x32xf32, #tpu.memory_space<vmem>>, vector<1x1x32xf32>
    %179 = vector.shape_cast %178 : vector<1x1x32xf32> to vector<1x32xf32>
    %c0_87 = arith.constant 0 : index
    %c0_88 = arith.constant 0 : index
    %c0_89 = arith.constant 0 : index
    %180 = vector.load %arg16[%c0_87, %c0_88, %c0_89] : memref<2x1x32xf32, #tpu.memory_space<vmem>>, vector<1x1x32xf32>
    %181 = vector.shape_cast %180 : vector<1x1x32xf32> to vector<1x32xf32>
    %cst_90 = arith.constant dense<0.000000e+00> : vector<16xf32>
    %182 = vector.multi_reduction <add>, %177, %cst_90 [1] : vector<16x32xf32> to vector<16xf32>
    %183 = vector.shape_cast %182 : vector<16xf32> to vector<16x1xf32>
    %cst_91 = arith.constant 3.200000e+01 : f32
    %184 = vector.broadcast %cst_91 : f32 to vector<16x1xf32>
    %185 = arith.divf %183, %184 : vector<16x1xf32>
    %186 = vector.broadcast %185 : vector<16x1xf32> to vector<16x32xf32>
    %187 = arith.subf %177, %186 : vector<16x32xf32>
    %188 = arith.mulf %187, %187 : vector<16x32xf32>
    %cst_92 = arith.constant dense<0.000000e+00> : vector<16xf32>
    %189 = vector.multi_reduction <add>, %188, %cst_92 [1] : vector<16x32xf32> to vector<16xf32>
    %190 = vector.shape_cast %189 : vector<16xf32> to vector<16x1xf32>
    %cst_93 = arith.constant 3.200000e+01 : f32
    %191 = vector.broadcast %cst_93 : f32 to vector<16x1xf32>
    %192 = arith.divf %190, %191 : vector<16x1xf32>
    %193 = vector.broadcast %185 : vector<16x1xf32> to vector<16x32xf32>
    %194 = arith.subf %177, %193 : vector<16x32xf32>
    %cst_94 = arith.constant 9.99999996E-13 : f32
    %195 = vector.broadcast %cst_94 : f32 to vector<16x1xf32>
    %196 = arith.addf %192, %195 : vector<16x1xf32>
    %197 = math.rsqrt %196 : vector<16x1xf32>
    %198 = vector.broadcast %197 : vector<16x1xf32> to vector<16x32xf32>
    %199 = arith.mulf %194, %198 : vector<16x32xf32>
    %200 = vector.broadcast %179 : vector<1x32xf32> to vector<16x32xf32>
    %201 = arith.mulf %199, %200 : vector<16x32xf32>
    %202 = vector.broadcast %181 : vector<1x32xf32> to vector<16x32xf32>
    %203 = arith.addf %201, %202 : vector<16x32xf32>
    %c1 = arith.constant 1 : index
    %c0_95 = arith.constant 0 : index
    %c0_96 = arith.constant 0 : index
    %204 = vector.load %arg5[%c1, %c0_95, %c0_96] : memref<2x32x96xf32, #tpu.memory_space<vmem>>, vector<1x32x96xf32>
    %205 = vector.shape_cast %204 : vector<1x32x96xf32> to vector<32x96xf32>
    %cst_97 = arith.constant dense<0.000000e+00> : vector<16x96xf32>
    %206 = tpu.matmul %203, %205, %cst_97 {dimension_numbers = #tpu.dot_dimension_numbers<[1], [0], [0], [1], [0, 0, 1, 1], [], []>} : vector<16x32xf32>, vector<32x96xf32>, vector<16x96xf32> -> vector<16x96xf32>
    %c1_98 = arith.constant 1 : index
    %c0_99 = arith.constant 0 : index
    %c0_100 = arith.constant 0 : index
    %207 = vector.load %arg6[%c1_98, %c0_99, %c0_100] : memref<2x1x96xf32, #tpu.memory_space<vmem>>, vector<1x1x96xf32>
    %208 = vector.shape_cast %207 : vector<1x1x96xf32> to vector<1x96xf32>
    %209 = vector.broadcast %208 : vector<1x96xf32> to vector<16x96xf32>
    %210 = arith.addf %206, %209 : vector<16x96xf32>
    %211 = vector.extract_strided_slice %29 {offsets = [0, 0], sizes = [1, 8], strides = [1, 1]} : vector<2x8xf32> to vector<1x8xf32>
    %212 = vector.extract_strided_slice %210 {offsets = [0, 0], sizes = [8, 16], strides = [1, 1]} : vector<16x96xf32> to vector<8x16xf32>
    %213 = vector.extract_strided_slice %210 {offsets = [0, 32], sizes = [8, 16], strides = [1, 1]} : vector<16x96xf32> to vector<8x16xf32>
    %214 = vector.extract_strided_slice %210 {offsets = [0, 64], sizes = [8, 16], strides = [1, 1]} : vector<16x96xf32> to vector<8x16xf32>
    %cst_101 = arith.constant dense<0.000000e+00> : vector<8x8xf32>
    %215 = tpu.matmul %212, %213, %cst_101 {dimension_numbers = #tpu.dot_dimension_numbers<[1], [1], [0], [0], [0, 0, 1, 0], [], []>} : vector<8x16xf32>, vector<8x16xf32>, vector<8x8xf32> -> vector<8x8xf32>
    %cst_102 = arith.constant 2.500000e-01 : f32
    %216 = vector.broadcast %cst_102 : f32 to vector<8x8xf32>
    %217 = arith.mulf %215, %216 : vector<8x8xf32>
    %218 = vector.broadcast %211 : vector<1x8xf32> to vector<8x8xf32>
    %219 = arith.addf %217, %218 : vector<8x8xf32>
    %cst_103 = arith.constant dense<0xFF800000> : vector<8xf32>
    %220 = vector.multi_reduction <maximumf>, %219, %cst_103 [1] : vector<8x8xf32> to vector<8xf32>
    %221 = vector.shape_cast %220 : vector<8xf32> to vector<8x1xf32>
    %222 = vector.broadcast %221 : vector<8x1xf32> to vector<8x8xf32>
    %223 = arith.subf %219, %222 : vector<8x8xf32>
    %224 = math.exp %223 : vector<8x8xf32>
    %cst_104 = arith.constant dense<0.000000e+00> : vector<8xf32>
    %225 = vector.multi_reduction <add>, %224, %cst_104 [1] : vector<8x8xf32> to vector<8xf32>
    %226 = vector.shape_cast %225 : vector<8xf32> to vector<8x1xf32>
    %227 = vector.broadcast %226 : vector<8x1xf32> to vector<8x8xf32>
    %228 = arith.divf %224, %227 : vector<8x8xf32>
    %cst_105 = arith.constant dense<0.000000e+00> : vector<8x16xf32>
    %229 = tpu.matmul %228, %214, %cst_105 {dimension_numbers = #tpu.dot_dimension_numbers<[1], [0], [0], [1], [0, 0, 1, 1], [], []>} : vector<8x8xf32>, vector<8x16xf32>, vector<8x16xf32> -> vector<8x16xf32>
    %c0_106 = arith.constant 0 : index
    %c0_107 = arith.constant 0 : index
    %230 = vector.load %arg28[%c0_106, %c0_107] : memref<16x32xf32, #tpu.memory_space<vmem>>, vector<8x16xf32>
    tpu.vector_store %arg28[%c0_106, %c0_107], %229 {strides = array<i32>} : memref<16x32xf32, #tpu.memory_space<vmem>>, vector<8x16xf32>,
    %231 = vector.extract_strided_slice %210 {offsets = [0, 16], sizes = [8, 16], strides = [1, 1]} : vector<16x96xf32> to vector<8x16xf32>
    %232 = vector.extract_strided_slice %210 {offsets = [0, 48], sizes = [8, 16], strides = [1, 1]} : vector<16x96xf32> to vector<8x16xf32>
    %233 = vector.extract_strided_slice %210 {offsets = [0, 80], sizes = [8, 16], strides = [1, 1]} : vector<16x96xf32> to vector<8x16xf32>
    %cst_108 = arith.constant dense<0.000000e+00> : vector<8x8xf32>
    %234 = tpu.matmul %231, %232, %cst_108 {dimension_numbers = #tpu.dot_dimension_numbers<[1], [1], [0], [0], [0, 0, 1, 0], [], []>} : vector<8x16xf32>, vector<8x16xf32>, vector<8x8xf32> -> vector<8x8xf32>
    %cst_109 = arith.constant 2.500000e-01 : f32
    %235 = vector.broadcast %cst_109 : f32 to vector<8x8xf32>
    %236 = arith.mulf %234, %235 : vector<8x8xf32>
    %237 = vector.broadcast %211 : vector<1x8xf32> to vector<8x8xf32>
    %238 = arith.addf %236, %237 : vector<8x8xf32>
    %cst_110 = arith.constant dense<0xFF800000> : vector<8xf32>
    %239 = vector.multi_reduction <maximumf>, %238, %cst_110 [1] : vector<8x8xf32> to vector<8xf32>
    %240 = vector.shape_cast %239 : vector<8xf32> to vector<8x1xf32>
    %241 = vector.broadcast %240 : vector<8x1xf32> to vector<8x8xf32>
    %242 = arith.subf %238, %241 : vector<8x8xf32>
    %243 = math.exp %242 : vector<8x8xf32>
    %cst_111 = arith.constant dense<0.000000e+00> : vector<8xf32>
    %244 = vector.multi_reduction <add>, %243, %cst_111 [1] : vector<8x8xf32> to vector<8xf32>
    %245 = vector.shape_cast %244 : vector<8xf32> to vector<8x1xf32>
    %246 = vector.broadcast %245 : vector<8x1xf32> to vector<8x8xf32>
    %247 = arith.divf %243, %246 : vector<8x8xf32>
    %cst_112 = arith.constant dense<0.000000e+00> : vector<8x16xf32>
    %248 = tpu.matmul %247, %233, %cst_112 {dimension_numbers = #tpu.dot_dimension_numbers<[1], [0], [0], [1], [0, 0, 1, 1], [], []>} : vector<8x8xf32>, vector<8x16xf32>, vector<8x16xf32> -> vector<8x16xf32>
    %c0_113 = arith.constant 0 : index
    %c16_114 = arith.constant 16 : index
    %249 = vector.load %arg28[%c0_113, %c16_114] : memref<16x32xf32, #tpu.memory_space<vmem>>, vector<8x16xf32>
    tpu.vector_store %arg28[%c0_113, %c16_114], %248 {strides = array<i32>} : memref<16x32xf32, #tpu.memory_space<vmem>>, vector<8x16xf32>,
    %250 = vector.extract_strided_slice %29 {offsets = [1, 0], sizes = [1, 8], strides = [1, 1]} : vector<2x8xf32> to vector<1x8xf32>
    %251 = vector.extract_strided_slice %210 {offsets = [8, 0], sizes = [8, 16], strides = [1, 1]} : vector<16x96xf32> to vector<8x16xf32>
    %252 = vector.extract_strided_slice %210 {offsets = [8, 32], sizes = [8, 16], strides = [1, 1]} : vector<16x96xf32> to vector<8x16xf32>
    %253 = vector.extract_strided_slice %210 {offsets = [8, 64], sizes = [8, 16], strides = [1, 1]} : vector<16x96xf32> to vector<8x16xf32>
    %cst_115 = arith.constant dense<0.000000e+00> : vector<8x8xf32>
    %254 = tpu.matmul %251, %252, %cst_115 {dimension_numbers = #tpu.dot_dimension_numbers<[1], [1], [0], [0], [0, 0, 1, 0], [], []>} : vector<8x16xf32>, vector<8x16xf32>, vector<8x8xf32> -> vector<8x8xf32>
    %cst_116 = arith.constant 2.500000e-01 : f32
    %255 = vector.broadcast %cst_116 : f32 to vector<8x8xf32>
    %256 = arith.mulf %254, %255 : vector<8x8xf32>
    %257 = vector.broadcast %250 : vector<1x8xf32> to vector<8x8xf32>
    %258 = arith.addf %256, %257 : vector<8x8xf32>
    %cst_117 = arith.constant dense<0xFF800000> : vector<8xf32>
    %259 = vector.multi_reduction <maximumf>, %258, %cst_117 [1] : vector<8x8xf32> to vector<8xf32>
    %260 = vector.shape_cast %259 : vector<8xf32> to vector<8x1xf32>
    %261 = vector.broadcast %260 : vector<8x1xf32> to vector<8x8xf32>
    %262 = arith.subf %258, %261 : vector<8x8xf32>
    %263 = math.exp %262 : vector<8x8xf32>
    %cst_118 = arith.constant dense<0.000000e+00> : vector<8xf32>
    %264 = vector.multi_reduction <add>, %263, %cst_118 [1] : vector<8x8xf32> to vector<8xf32>
    %265 = vector.shape_cast %264 : vector<8xf32> to vector<8x1xf32>
    %266 = vector.broadcast %265 : vector<8x1xf32> to vector<8x8xf32>
    %267 = arith.divf %263, %266 : vector<8x8xf32>
    %cst_119 = arith.constant dense<0.000000e+00> : vector<8x16xf32>
    %268 = tpu.matmul %267, %253, %cst_119 {dimension_numbers = #tpu.dot_dimension_numbers<[1], [0], [0], [1], [0, 0, 1, 1], [], []>} : vector<8x8xf32>, vector<8x16xf32>, vector<8x16xf32> -> vector<8x16xf32>
    %c8_120 = arith.constant 8 : index
    %c0_121 = arith.constant 0 : index
    %269 = vector.load %arg28[%c8_120, %c0_121] : memref<16x32xf32, #tpu.memory_space<vmem>>, vector<8x16xf32>
    tpu.vector_store %arg28[%c8_120, %c0_121], %268 {strides = array<i32>} : memref<16x32xf32, #tpu.memory_space<vmem>>, vector<8x16xf32>,
    %270 = vector.extract_strided_slice %210 {offsets = [8, 16], sizes = [8, 16], strides = [1, 1]} : vector<16x96xf32> to vector<8x16xf32>
    %271 = vector.extract_strided_slice %210 {offsets = [8, 48], sizes = [8, 16], strides = [1, 1]} : vector<16x96xf32> to vector<8x16xf32>
    %272 = vector.extract_strided_slice %210 {offsets = [8, 80], sizes = [8, 16], strides = [1, 1]} : vector<16x96xf32> to vector<8x16xf32>
    %cst_122 = arith.constant dense<0.000000e+00> : vector<8x8xf32>
    %273 = tpu.matmul %270, %271, %cst_122 {dimension_numbers = #tpu.dot_dimension_numbers<[1], [1], [0], [0], [0, 0, 1, 0], [], []>} : vector<8x16xf32>, vector<8x16xf32>, vector<8x8xf32> -> vector<8x8xf32>
    %cst_123 = arith.constant 2.500000e-01 : f32
    %274 = vector.broadcast %cst_123 : f32 to vector<8x8xf32>
    %275 = arith.mulf %273, %274 : vector<8x8xf32>
    %276 = vector.broadcast %250 : vector<1x8xf32> to vector<8x8xf32>
    %277 = arith.addf %275, %276 : vector<8x8xf32>
    %cst_124 = arith.constant dense<0xFF800000> : vector<8xf32>
    %278 = vector.multi_reduction <maximumf>, %277, %cst_124 [1] : vector<8x8xf32> to vector<8xf32>
    %279 = vector.shape_cast %278 : vector<8xf32> to vector<8x1xf32>
    %280 = vector.broadcast %279 : vector<8x1xf32> to vector<8x8xf32>
    %281 = arith.subf %277, %280 : vector<8x8xf32>
    %282 = math.exp %281 : vector<8x8xf32>
    %cst_125 = arith.constant dense<0.000000e+00> : vector<8xf32>
    %283 = vector.multi_reduction <add>, %282, %cst_125 [1] : vector<8x8xf32> to vector<8xf32>
    %284 = vector.shape_cast %283 : vector<8xf32> to vector<8x1xf32>
    %285 = vector.broadcast %284 : vector<8x1xf32> to vector<8x8xf32>
    %286 = arith.divf %282, %285 : vector<8x8xf32>
    %cst_126 = arith.constant dense<0.000000e+00> : vector<8x16xf32>
    %287 = tpu.matmul %286, %272, %cst_126 {dimension_numbers = #tpu.dot_dimension_numbers<[1], [0], [0], [1], [0, 0, 1, 1], [], []>} : vector<8x8xf32>, vector<8x16xf32>, vector<8x16xf32> -> vector<8x16xf32>
    %c8_127 = arith.constant 8 : index
    %c16_128 = arith.constant 16 : index
    %288 = vector.load %arg28[%c8_127, %c16_128] : memref<16x32xf32, #tpu.memory_space<vmem>>, vector<8x16xf32>
    tpu.vector_store %arg28[%c8_127, %c16_128], %287 {strides = array<i32>} : memref<16x32xf32, #tpu.memory_space<vmem>>, vector<8x16xf32>,
    %c0_129 = arith.constant 0 : index
    %c0_130 = arith.constant 0 : index
    %289 = vector.load %arg28[%c0_129, %c0_130] : memref<16x32xf32, #tpu.memory_space<vmem>>, vector<16x32xf32>
    %c1_131 = arith.constant 1 : index
    %c0_132 = arith.constant 0 : index
    %c0_133 = arith.constant 0 : index
    %290 = vector.load %arg7[%c1_131, %c0_132, %c0_133] : memref<2x32x32xf32, #tpu.memory_space<vmem>>, vector<1x32x32xf32>
    %291 = vector.shape_cast %290 : vector<1x32x32xf32> to vector<32x32xf32>
    %cst_134 = arith.constant dense<0.000000e+00> : vector<16x32xf32>
    %292 = tpu.matmul %289, %291, %cst_134 {dimension_numbers = #tpu.dot_dimension_numbers<[1], [0], [0], [1], [0, 0, 1, 1], [], []>} : vector<16x32xf32>, vector<32x32xf32>, vector<16x32xf32> -> vector<16x32xf32>
    %c1_135 = arith.constant 1 : index
    %c0_136 = arith.constant 0 : index
    %c0_137 = arith.constant 0 : index
    %293 = vector.load %arg8[%c1_135, %c0_136, %c0_137] : memref<2x1x32xf32, #tpu.memory_space<vmem>>, vector<1x1x32xf32>
    %294 = vector.shape_cast %293 : vector<1x1x32xf32> to vector<1x32xf32>
    %295 = vector.broadcast %294 : vector<1x32xf32> to vector<16x32xf32>
    %296 = arith.addf %292, %295 : vector<16x32xf32>
    %297 = arith.addf %203, %296 : vector<16x32xf32>
    %c1_138 = arith.constant 1 : index
    %c0_139 = arith.constant 0 : index
    %c0_140 = arith.constant 0 : index
    %298 = vector.load %arg9[%c1_138, %c0_139, %c0_140] : memref<2x1x32xf32, #tpu.memory_space<vmem>>, vector<1x1x32xf32>
    %299 = vector.shape_cast %298 : vector<1x1x32xf32> to vector<1x32xf32>
    %c1_141 = arith.constant 1 : index
    %c0_142 = arith.constant 0 : index
    %c0_143 = arith.constant 0 : index
    %300 = vector.load %arg10[%c1_141, %c0_142, %c0_143] : memref<2x1x32xf32, #tpu.memory_space<vmem>>, vector<1x1x32xf32>
    %301 = vector.shape_cast %300 : vector<1x1x32xf32> to vector<1x32xf32>
    %cst_144 = arith.constant dense<0.000000e+00> : vector<16xf32>
    %302 = vector.multi_reduction <add>, %297, %cst_144 [1] : vector<16x32xf32> to vector<16xf32>
    %303 = vector.shape_cast %302 : vector<16xf32> to vector<16x1xf32>
    %cst_145 = arith.constant 3.200000e+01 : f32
    %304 = vector.broadcast %cst_145 : f32 to vector<16x1xf32>
    %305 = arith.divf %303, %304 : vector<16x1xf32>
    %306 = vector.broadcast %305 : vector<16x1xf32> to vector<16x32xf32>
    %307 = arith.subf %297, %306 : vector<16x32xf32>
    %308 = arith.mulf %307, %307 : vector<16x32xf32>
    %cst_146 = arith.constant dense<0.000000e+00> : vector<16xf32>
    %309 = vector.multi_reduction <add>, %308, %cst_146 [1] : vector<16x32xf32> to vector<16xf32>
    %310 = vector.shape_cast %309 : vector<16xf32> to vector<16x1xf32>
    %cst_147 = arith.constant 3.200000e+01 : f32
    %311 = vector.broadcast %cst_147 : f32 to vector<16x1xf32>
    %312 = arith.divf %310, %311 : vector<16x1xf32>
    %313 = vector.broadcast %305 : vector<16x1xf32> to vector<16x32xf32>
    %314 = arith.subf %297, %313 : vector<16x32xf32>
    %cst_148 = arith.constant 9.99999996E-13 : f32
    %315 = vector.broadcast %cst_148 : f32 to vector<16x1xf32>
    %316 = arith.addf %312, %315 : vector<16x1xf32>
    %317 = math.rsqrt %316 : vector<16x1xf32>
    %318 = vector.broadcast %317 : vector<16x1xf32> to vector<16x32xf32>
    %319 = arith.mulf %314, %318 : vector<16x32xf32>
    %320 = vector.broadcast %299 : vector<1x32xf32> to vector<16x32xf32>
    %321 = arith.mulf %319, %320 : vector<16x32xf32>
    %322 = vector.broadcast %301 : vector<1x32xf32> to vector<16x32xf32>
    %323 = arith.addf %321, %322 : vector<16x32xf32>
    %c1_149 = arith.constant 1 : index
    %c0_150 = arith.constant 0 : index
    %c0_151 = arith.constant 0 : index
    %324 = vector.load %arg11[%c1_149, %c0_150, %c0_151] : memref<2x32x64xf32, #tpu.memory_space<vmem>>, vector<1x32x64xf32>
    %325 = vector.shape_cast %324 : vector<1x32x64xf32> to vector<32x64xf32>
    %cst_152 = arith.constant dense<0.000000e+00> : vector<16x64xf32>
    %326 = tpu.matmul %323, %325, %cst_152 {dimension_numbers = #tpu.dot_dimension_numbers<[1], [0], [0], [1], [0, 0, 1, 1], [], []>} : vector<16x32xf32>, vector<32x64xf32>, vector<16x64xf32> -> vector<16x64xf32>
    %c1_153 = arith.constant 1 : index
    %c0_154 = arith.constant 0 : index
    %c0_155 = arith.constant 0 : index
    %327 = vector.load %arg12[%c1_153, %c0_154, %c0_155] : memref<2x1x64xf32, #tpu.memory_space<vmem>>, vector<1x1x64xf32>
    %328 = vector.shape_cast %327 : vector<1x1x64xf32> to vector<1x64xf32>
    %329 = vector.broadcast %328 : vector<1x64xf32> to vector<16x64xf32>
    %330 = arith.addf %326, %329 : vector<16x64xf32>
    %331 = arith.mulf %330, %330 : vector<16x64xf32>
    %332 = arith.mulf %330, %331 : vector<16x64xf32>
    %cst_156 = arith.constant 4.471500e-02 : f32
    %333 = vector.broadcast %cst_156 : f32 to vector<16x64xf32>
    %334 = arith.mulf %333, %332 : vector<16x64xf32>
    %335 = arith.addf %330, %334 : vector<16x64xf32>
    %cst_157 = arith.constant 0.797884583 : f32
    %336 = vector.broadcast %cst_157 : f32 to vector<16x64xf32>
    %337 = arith.mulf %336, %335 : vector<16x64xf32>
    %338 = math.tanh %337 : vector<16x64xf32>
    %cst_158 = arith.constant 1.000000e+00 : f32
    %339 = vector.broadcast %cst_158 : f32 to vector<16x64xf32>
    %340 = arith.addf %339, %338 : vector<16x64xf32>
    %cst_159 = arith.constant 5.000000e-01 : f32
    %341 = vector.broadcast %cst_159 : f32 to vector<16x64xf32>
    %342 = arith.mulf %341, %340 : vector<16x64xf32>
    %343 = arith.mulf %330, %342 : vector<16x64xf32>
    %c1_160 = arith.constant 1 : index
    %c0_161 = arith.constant 0 : index
    %c0_162 = arith.constant 0 : index
    %344 = vector.load %arg13[%c1_160, %c0_161, %c0_162] : memref<2x64x32xf32, #tpu.memory_space<vmem>>, vector<1x64x32xf32>
    %345 = vector.shape_cast %344 : vector<1x64x32xf32> to vector<64x32xf32>
    %cst_163 = arith.constant dense<0.000000e+00> : vector<16x32xf32>
    %346 = tpu.matmul %343, %345, %cst_163 {dimension_numbers = #tpu.dot_dimension_numbers<[1], [0], [0], [1], [0, 0, 1, 1], [], []>} : vector<16x64xf32>, vector<64x32xf32>, vector<16x32xf32> -> vector<16x32xf32>
    %c1_164 = arith.constant 1 : index
    %c0_165 = arith.constant 0 : index
    %c0_166 = arith.constant 0 : index
    %347 = vector.load %arg14[%c1_164, %c0_165, %c0_166] : memref<2x1x32xf32, #tpu.memory_space<vmem>>, vector<1x1x32xf32>
    %348 = vector.shape_cast %347 : vector<1x1x32xf32> to vector<1x32xf32>
    %349 = vector.broadcast %348 : vector<1x32xf32> to vector<16x32xf32>
    %350 = arith.addf %346, %349 : vector<16x32xf32>
    %351 = arith.addf %323, %350 : vector<16x32xf32>
    %c1_167 = arith.constant 1 : index
    %c0_168 = arith.constant 0 : index
    %c0_169 = arith.constant 0 : index
    %352 = vector.load %arg15[%c1_167, %c0_168, %c0_169] : memref<2x1x32xf32, #tpu.memory_space<vmem>>, vector<1x1x32xf32>
    %353 = vector.shape_cast %352 : vector<1x1x32xf32> to vector<1x32xf32>
    %c1_170 = arith.constant 1 : index
    %c0_171 = arith.constant 0 : index
    %c0_172 = arith.constant 0 : index
    %354 = vector.load %arg16[%c1_170, %c0_171, %c0_172] : memref<2x1x32xf32, #tpu.memory_space<vmem>>, vector<1x1x32xf32>
    %355 = vector.shape_cast %354 : vector<1x1x32xf32> to vector<1x32xf32>
    %cst_173 = arith.constant dense<0.000000e+00> : vector<16xf32>
    %356 = vector.multi_reduction <add>, %351, %cst_173 [1] : vector<16x32xf32> to vector<16xf32>
    %357 = vector.shape_cast %356 : vector<16xf32> to vector<16x1xf32>
    %cst_174 = arith.constant 3.200000e+01 : f32
    %358 = vector.broadcast %cst_174 : f32 to vector<16x1xf32>
    %359 = arith.divf %357, %358 : vector<16x1xf32>
    %360 = vector.broadcast %359 : vector<16x1xf32> to vector<16x32xf32>
    %361 = arith.subf %351, %360 : vector<16x32xf32>
    %362 = arith.mulf %361, %361 : vector<16x32xf32>
    %cst_175 = arith.constant dense<0.000000e+00> : vector<16xf32>
    %363 = vector.multi_reduction <add>, %362, %cst_175 [1] : vector<16x32xf32> to vector<16xf32>
    %364 = vector.shape_cast %363 : vector<16xf32> to vector<16x1xf32>
    %cst_176 = arith.constant 3.200000e+01 : f32
    %365 = vector.broadcast %cst_176 : f32 to vector<16x1xf32>
    %366 = arith.divf %364, %365 : vector<16x1xf32>
    %367 = vector.broadcast %359 : vector<16x1xf32> to vector<16x32xf32>
    %368 = arith.subf %351, %367 : vector<16x32xf32>
    %cst_177 = arith.constant 9.99999996E-13 : f32
    %369 = vector.broadcast %cst_177 : f32 to vector<16x1xf32>
    %370 = arith.addf %366, %369 : vector<16x1xf32>
    %371 = math.rsqrt %370 : vector<16x1xf32>
    %372 = vector.broadcast %371 : vector<16x1xf32> to vector<16x32xf32>
    %373 = arith.mulf %368, %372 : vector<16x32xf32>
    %374 = vector.broadcast %353 : vector<1x32xf32> to vector<16x32xf32>
    %375 = arith.mulf %373, %374 : vector<16x32xf32>
    %376 = vector.broadcast %355 : vector<1x32xf32> to vector<16x32xf32>
    %377 = arith.addf %375, %376 : vector<16x32xf32>
    %c0_178 = arith.constant 0 : index
    %c0_179 = arith.constant 0 : index
    %378 = vector.load %arg17[%c0_178, %c0_179] : memref<128x32xf32, #tpu.memory_space<vmem>>, vector<128x32xf32>
    %cst_180 = arith.constant dense<0.000000e+00> : vector<16x128xf32>
    %379 = tpu.matmul %377, %378, %cst_180 {dimension_numbers = #tpu.dot_dimension_numbers<[1], [1], [0], [0], [0, 0, 1, 0], [], []>} : vector<16x32xf32>, vector<128x32xf32>, vector<16x128xf32> -> vector<16x128xf32>
    %c0_181 = arith.constant 0 : index
    %c0_182 = arith.constant 0 : index
    %380 = vector.load %arg18[%c0_181, %c0_182] : memref<1x128xf32, #tpu.memory_space<vmem>>, vector<1x128xf32>
    %381 = vector.broadcast %380 : vector<1x128xf32> to vector<16x128xf32>
    %382 = arith.addf %379, %381 : vector<16x128xf32>
    %cst_183 = arith.constant dense<0xFF800000> : vector<16xf32>
    %383 = vector.multi_reduction <maximumf>, %382, %cst_183 [1] : vector<16x128xf32> to vector<16xf32>
    %384 = vector.shape_cast %383 : vector<16xf32> to vector<16x1xf32>
    %385 = vector.broadcast %384 : vector<16x1xf32> to vector<16x128xf32>
    %386 = arith.subf %382, %385 : vector<16x128xf32>
    %387 = math.exp %386 : vector<16x128xf32>
    %cst_184 = arith.constant dense<0.000000e+00> : vector<16xf32>
    %388 = vector.multi_reduction <add>, %387, %cst_184 [1] : vector<16x128xf32> to vector<16xf32>
    %389 = vector.shape_cast %388 : vector<16xf32> to vector<16x1xf32>
    %390 = math.log %389 : vector<16x1xf32>
    %391 = vector.broadcast %390 : vector<16x1xf32> to vector<16x128xf32>
    %392 = arith.subf %386, %391 : vector<16x128xf32>
    %c0_185 = arith.constant 0 : index
    %c0_186 = arith.constant 0 : index
    %393 = vector.load %arg25[%c0_185, %c0_186] : memref<16x128xf32, #tpu.memory_space<vmem>>, vector<16x128xf32>
    tpu.vector_store %arg25[%c0_185, %c0_186], %392 {strides = array<i32>} : memref<16x128xf32, #tpu.memory_space<vmem>>, vector<16x128xf32>,
    %c0_187 = arith.constant 0 : index
    %c0_188 = arith.constant 0 : index
    %394 = vector.load %arg23[%c0_187, %c0_188] : memref<1x32xf32, #tpu.memory_space<vmem>>, vector<1x32xf32>
    %c0_189 = arith.constant 0 : index
    %c0_190 = arith.constant 0 : index
    %395 = vector.load %arg24[%c0_189, %c0_190] : memref<1x1xf32, #tpu.memory_space<vmem>>, vector<1x1xf32>
    %c0_191 = arith.constant 0 : index
    %c0_192 = arith.constant 0 : index
    %396 = vector.load %arg19[%c0_191, %c0_192] : memref<32x32xf32, #tpu.memory_space<vmem>>, vector<32x32xf32>
    %cst_193 = arith.constant dense<0.000000e+00> : vector<16x32xf32>
    %397 = tpu.matmul %377, %396, %cst_193 {dimension_numbers = #tpu.dot_dimension_numbers<[1], [0], [0], [1], [0, 0, 1, 1], [], []>} : vector<16x32xf32>, vector<32x32xf32>, vector<16x32xf32> -> vector<16x32xf32>
    %c0_194 = arith.constant 0 : index
    %c0_195 = arith.constant 0 : index
    %398 = vector.load %arg20[%c0_194, %c0_195] : memref<1x32xf32, #tpu.memory_space<vmem>>, vector<1x32xf32>
    %399 = vector.broadcast %398 : vector<1x32xf32> to vector<16x32xf32>
    %400 = arith.addf %397, %399 : vector<16x32xf32>
    %401 = math.tanh %400 : vector<16x32xf32>
    %402 = vector.broadcast %394 : vector<1x32xf32> to vector<16x32xf32>
    %403 = arith.mulf %401, %402 : vector<16x32xf32>
    %cst_196 = arith.constant dense<0.000000e+00> : vector<16xf32>
    %404 = vector.multi_reduction <add>, %403, %cst_196 [1] : vector<16x32xf32> to vector<16xf32>
    %405 = vector.shape_cast %404 : vector<16xf32> to vector<16x1xf32>
    %406 = vector.broadcast %395 : vector<1x1xf32> to vector<16x1xf32>
    %407 = arith.addf %405, %406 : vector<16x1xf32>
    %408 = arith.negf %407 : vector<16x1xf32>
    %409 = math.exp %408 : vector<16x1xf32>
    %cst_197 = arith.constant 1.000000e+00 : f32
    %410 = vector.broadcast %cst_197 : f32 to vector<16x1xf32>
    %411 = arith.addf %410, %409 : vector<16x1xf32>
    %412 = arith.divf %410, %411 : vector<16x1xf32>
    %413 = vector.extract_strided_slice %412 {offsets = [0, 0], sizes = [1, 1], strides = [1, 1]} : vector<16x1xf32> to vector<1x1xf32>
    %c0_198 = arith.constant 0 : index
    %c0_199 = arith.constant 0 : index
    %414 = vector.load %arg26[%c0_198, %c0_199] : memref<2x1xf32, #tpu.memory_space<vmem>>, vector<1x1xf32>
    tpu.vector_store %arg26[%c0_198, %c0_199], %413 {strides = array<i32>} : memref<2x1xf32, #tpu.memory_space<vmem>>, vector<1x1xf32>,
    %415 = vector.extract_strided_slice %412 {offsets = [8, 0], sizes = [1, 1], strides = [1, 1]} : vector<16x1xf32> to vector<1x1xf32>
    %c1_200 = arith.constant 1 : index
    %c0_201 = arith.constant 0 : index
    %416 = vector.load %arg26[%c1_200, %c0_201] : memref<2x1xf32, #tpu.memory_space<vmem>>, vector<1x1xf32>
    tpu.vector_store %arg26[%c1_200, %c0_201], %415 {strides = array<i32>} : memref<2x1xf32, #tpu.memory_space<vmem>>, vector<1x1xf32>,
    %c0_202 = arith.constant 0 : index
    %c0_203 = arith.constant 0 : index
    %417 = vector.load %arg21[%c0_202, %c0_203] : memref<32x32xf32, #tpu.memory_space<vmem>>, vector<32x32xf32>
    %cst_204 = arith.constant dense<0.000000e+00> : vector<16x32xf32>
    %418 = tpu.matmul %377, %417, %cst_204 {dimension_numbers = #tpu.dot_dimension_numbers<[1], [0], [0], [1], [0, 0, 1, 1], [], []>} : vector<16x32xf32>, vector<32x32xf32>, vector<16x32xf32> -> vector<16x32xf32>
    %c0_205 = arith.constant 0 : index
    %c0_206 = arith.constant 0 : index
    %419 = vector.load %arg22[%c0_205, %c0_206] : memref<1x32xf32, #tpu.memory_space<vmem>>, vector<1x32xf32>
    %420 = vector.broadcast %419 : vector<1x32xf32> to vector<16x32xf32>
    %421 = arith.addf %418, %420 : vector<16x32xf32>
    %422 = math.tanh %421 : vector<16x32xf32>
    %423 = vector.broadcast %394 : vector<1x32xf32> to vector<16x32xf32>
    %424 = arith.mulf %422, %423 : vector<16x32xf32>
    %cst_207 = arith.constant dense<0.000000e+00> : vector<16xf32>
    %425 = vector.multi_reduction <add>, %424, %cst_207 [1] : vector<16x32xf32> to vector<16xf32>
    %426 = vector.shape_cast %425 : vector<16xf32> to vector<16x1xf32>
    %427 = vector.broadcast %395 : vector<1x1xf32> to vector<16x1xf32>
    %428 = arith.addf %426, %427 : vector<16x1xf32>
    %c0_208 = arith.constant 0 : index
    %c0_209 = arith.constant 0 : index
    %429 = vector.load %arg27[%c0_208, %c0_209] : memref<16x1xf32, #tpu.memory_space<vmem>>, vector<16x1xf32>
    tpu.vector_store %arg27[%c0_208, %c0_209], %428 {strides = array<i32>} : memref<16x1xf32, #tpu.memory_space<vmem>>, vector<16x1xf32>,
    return
  }
  func.func @transform_0(%arg0: i32) -> (i32, i32) {
    %c0_i32 = arith.constant 0 : i32
    %c0_i32_0 = arith.constant 0 : i32
    %c0_i32_1 = arith.constant 0 : i32
    return %c0_i32, %c0_i32_0 : i32, i32
  }
  func.func @transform_1(%arg0: i32) -> (i32, i32) {
    %c0_i32 = arith.constant 0 : i32
    %c0_i32_0 = arith.constant 0 : i32
    %c0_i32_1 = arith.constant 0 : i32
    return %c0_i32, %c0_i32_0 : i32, i32
  }
  func.func @transform_2(%arg0: i32) -> (i32, i32) {
    %c0_i32 = arith.constant 0 : i32
    %c0_i32_0 = arith.constant 0 : i32
    %c0_i32_1 = arith.constant 0 : i32
    return %c0_i32, %c0_i32_0 : i32, i32
  }
  func.func @transform_3(%arg0: i32) -> (i32, i32) {
    %c0_i32 = arith.constant 0 : i32
    %c0_i32_0 = arith.constant 0 : i32
    %c0_i32_1 = arith.constant 0 : i32
    return %c0_i32, %c0_i32_0 : i32, i32
  }
  func.func @transform_4(%arg0: i32) -> (i32, i32, i32) {
    %c0_i32 = arith.constant 0 : i32
    %c0_i32_0 = arith.constant 0 : i32
    %c0_i32_1 = arith.constant 0 : i32
    %c0_i32_2 = arith.constant 0 : i32
    return %c0_i32, %c0_i32_0, %c0_i32_1 : i32, i32, i32
  }
  func.func @transform_5(%arg0: i32) -> (i32, i32, i32) {
    %c0_i32 = arith.constant 0 : i32
    %c0_i32_0 = arith.constant 0 : i32
    %c0_i32_1 = arith.constant 0 : i32
    %c0_i32_2 = arith.constant 0 : i32
    return %c0_i32, %c0_i32_0, %c0_i32_1 : i32, i32, i32
  }
  func.func @transform_6(%arg0: i32) -> (i32, i32, i32) {
    %c0_i32 = arith.constant 0 : i32
    %c0_i32_0 = arith.constant 0 : i32
    %c0_i32_1 = arith.constant 0 : i32
    %c0_i32_2 = arith.constant 0 : i32
    return %c0_i32, %c0_i32_0, %c0_i32_1 : i32, i32, i32
  }
  func.func @transform_7(%arg0: i32) -> (i32, i32, i32) {
    %c0_i32 = arith.constant 0 : i32
    %c0_i32_0 = arith.constant 0 : i32
    %c0_i32_1 = arith.constant 0 : i32
    %c0_i32_2 = arith.constant 0 : i32
    return %c0_i32, %c0_i32_0, %c0_i32_1 : i32, i32, i32
  }
  func.func @transform_8(%arg0: i32) -> (i32, i32, i32) {
    %c0_i32 = arith.constant 0 : i32
    %c0_i32_0 = arith.constant 0 : i32
    %c0_i32_1 = arith.constant 0 : i32
    %c0_i32_2 = arith.constant 0 : i32
    return %c0_i32, %c0_i32_0, %c0_i32_1 : i32, i32, i32
  }
  func.func @transform_9(%arg0: i32) -> (i32, i32, i32) {
    %c0_i32 = arith.constant 0 : i32
    %c0_i32_0 = arith.constant 0 : i32
    %c0_i32_1 = arith.constant 0 : i32
    %c0_i32_2 = arith.constant 0 : i32
    return %c0_i32, %c0_i32_0, %c0_i32_1 : i32, i32, i32
  }
  func.func @transform_10(%arg0: i32) -> (i32, i32, i32) {
    %c0_i32 = arith.constant 0 : i32
    %c0_i32_0 = arith.constant 0 : i32
    %c0_i32_1 = arith.constant 0 : i32
    %c0_i32_2 = arith.constant 0 : i32
    return %c0_i32, %c0_i32_0, %c0_i32_1 : i32, i32, i32
  }
  func.func @transform_11(%arg0: i32) -> (i32, i32, i32) {
    %c0_i32 = arith.constant 0 : i32
    %c0_i32_0 = arith.constant 0 : i32
    %c0_i32_1 = arith.constant 0 : i32
    %c0_i32_2 = arith.constant 0 : i32
    return %c0_i32, %c0_i32_0, %c0_i32_1 : i32, i32, i32
  }
  func.func @transform_12(%arg0: i32) -> (i32, i32, i32) {
    %c0_i32 = arith.constant 0 : i32
    %c0_i32_0 = arith.constant 0 : i32
    %c0_i32_1 = arith.constant 0 : i32
    %c0_i32_2 = arith.constant 0 : i32
    return %c0_i32, %c0_i32_0, %c0_i32_1 : i32, i32, i32
  }
  func.func @transform_13(%arg0: i32) -> (i32, i32, i32) {
    %c0_i32 = arith.constant 0 : i32
    %c0_i32_0 = arith.constant 0 : i32
    %c0_i32_1 = arith.constant 0 : i32
    %c0_i32_2 = arith.constant 0 : i32
    return %c0_i32, %c0_i32_0, %c0_i32_1 : i32, i32, i32
  }
  func.func @transform_14(%arg0: i32) -> (i32, i32, i32) {
    %c0_i32 = arith.constant 0 : i32
    %c0_i32_0 = arith.constant 0 : i32
    %c0_i32_1 = arith.constant 0 : i32
    %c0_i32_2 = arith.constant 0 : i32
    return %c0_i32, %c0_i32_0, %c0_i32_1 : i32, i32, i32
  }
  func.func @transform_15(%arg0: i32) -> (i32, i32, i32) {
    %c0_i32 = arith.constant 0 : i32
    %c0_i32_0 = arith.constant 0 : i32
    %c0_i32_1 = arith.constant 0 : i32
    %c0_i32_2 = arith.constant 0 : i32
    return %c0_i32, %c0_i32_0, %c0_i32_1 : i32, i32, i32
  }
  func.func @transform_16(%arg0: i32) -> (i32, i32) {
    %c0_i32 = arith.constant 0 : i32
    %c0_i32_0 = arith.constant 0 : i32
    %c0_i32_1 = arith.constant 0 : i32
    return %c0_i32, %c0_i32_0 : i32, i32
  }
  func.func @transform_17(%arg0: i32) -> (i32, i32) {
    %c0_i32 = arith.constant 0 : i32
    %c0_i32_0 = arith.constant 0 : i32
    %c0_i32_1 = arith.constant 0 : i32
    return %c0_i32, %c0_i32_0 : i32, i32
  }
  func.func @transform_18(%arg0: i32) -> (i32, i32) {
    %c0_i32 = arith.constant 0 : i32
    %c0_i32_0 = arith.constant 0 : i32
    %c0_i32_1 = arith.constant 0 : i32
    return %c0_i32, %c0_i32_0 : i32, i32
  }
  func.func @transform_19(%arg0: i32) -> (i32, i32) {
    %c0_i32 = arith.constant 0 : i32
    %c0_i32_0 = arith.constant 0 : i32
    %c0_i32_1 = arith.constant 0 : i32
    return %c0_i32, %c0_i32_0 : i32, i32
  }
  func.func @transform_20(%arg0: i32) -> (i32, i32) {
    %c0_i32 = arith.constant 0 : i32
    %c0_i32_0 = arith.constant 0 : i32
    %c0_i32_1 = arith.constant 0 : i32
    return %c0_i32, %c0_i32_0 : i32, i32
  }
  func.func @transform_21(%arg0: i32) -> (i32, i32) {
    %c0_i32 = arith.constant 0 : i32
    %c0_i32_0 = arith.constant 0 : i32
    %c0_i32_1 = arith.constant 0 : i32
    return %c0_i32, %c0_i32_0 : i32, i32
  }
  func.func @transform_22(%arg0: i32) -> (i32, i32) {
    %c0_i32 = arith.constant 0 : i32
    %c0_i32_0 = arith.constant 0 : i32
    %c0_i32_1 = arith.constant 0 : i32
    return %c0_i32, %c0_i32_0 : i32, i32
  }
  func.func @transform_23(%arg0: i32) -> (i32, i32) {
    %c0_i32 = arith.constant 0 : i32
    %c0_i32_0 = arith.constant 0 : i32
    %c0_i32_1 = arith.constant 0 : i32
    return %c0_i32, %c0_i32_0 : i32, i32
  }
  func.func @transform_24(%arg0: i32) -> (i32, i32) {
    %c0_i32 = arith.constant 0 : i32
    %c0_i32_0 = arith.constant 0 : i32
    %c0_i32_1 = arith.constant 0 : i32
    return %c0_i32, %c0_i32_0 : i32, i32
  }
  func.func @transform_25(%arg0: i32) -> (i32, i32) {
    %c0_i32 = arith.constant 0 : i32
    %c0_i32_0 = arith.constant 0 : i32
    %c0_i32_1 = arith.constant 0 : i32
    return %c0_i32, %c0_i32_0 : i32, i32
  }
  func.func @transform_26(%arg0: i32) -> (i32, i32) {
    %c0_i32 = arith.constant 0 : i32
    %c0_i32_0 = arith.constant 0 : i32
    %c0_i32_1 = arith.constant 0 : i32
    return %c0_i32, %c0_i32_0 : i32, i32
  }
}

</mosaic_0001>

<llo_original>
// kernel: bert_csc_forward.1
$region0: #{bert_csc_forward.1}
  #allocation0 [shape = 'u32[]', space=smem, size = 0x4, offset = 0x4, fixed_abs, tag = 'smem constant byte address 0x4 - core index']
  #allocation1 [shape = 'u32[72,128]{1,0:T(1,128)}', space=vmem, size = 0x9000, scoped, tag = 'internal scratch']
  #allocation2 [shape = 'f32[16,32]{1,0:T(8,128)}', space=vmem, size = 0x2000, scoped, tag = 'scratch operand']
  #allocation3 [shape = 'f32[1,1]{1,0:T(1,128)S(1)}', space=vmem, size = 0x200, scoped, tag = 'scoped memory for bert_csc_forward.1']
  %s0 = inlined_call_operand.vmem [shape: f32[16,32], index: 0, kind: input, shape index: {}]
  %s1 = inlined_call_operand.vmem [shape: f32[2,8], index: 1, kind: input, shape index: {}]
  %s2 = inlined_call_operand.vmem [shape: f32[1,32], index: 2, kind: input, shape index: {}]
  %s3 = inlined_call_operand.vmem [shape: f32[1,32], index: 3, kind: input, shape index: {}]
  %s4 = inlined_call_operand.vmem [shape: f32[2,32,96], index: 4, kind: input, shape index: {}]
  %s5 = inlined_call_operand.vmem [shape: f32[2,1,96], index: 5, kind: input, shape index: {}]
  %s6 = inlined_call_operand.vmem [shape: f32[2,32,32], index: 6, kind: input, shape index: {}]
  %s7 = inlined_call_operand.vmem [shape: f32[2,1,32], index: 7, kind: input, shape index: {}]
  %s8 = inlined_call_operand.vmem [shape: f32[2,1,32], index: 8, kind: input, shape index: {}]
  %s9 = inlined_call_operand.vmem [shape: f32[2,1,32], index: 9, kind: input, shape index: {}]
  %s10 = inlined_call_operand.vmem [shape: f32[2,32,64], index: 10, kind: input, shape index: {}]
  %s11 = inlined_call_operand.vmem [shape: f32[2,1,64], index: 11, kind: input, shape index: {}]
  %s12 = inlined_call_operand.vmem [shape: f32[2,64,32], index: 12, kind: input, shape index: {}]
  %s13 = inlined_call_operand.vmem [shape: f32[2,1,32], index: 13, kind: input, shape index: {}]
  %s14 = inlined_call_operand.vmem [shape: f32[2,1,32], index: 14, kind: input, shape index: {}]
  %s15 = inlined_call_operand.vmem [shape: f32[2,1,32], index: 15, kind: input, shape index: {}]
  %s16 = inlined_call_operand.vmem [shape: f32[128,32], index: 16, kind: input, shape index: {}]
  %s17 = inlined_call_operand.vmem [shape: f32[1,128], index: 17, kind: input, shape index: {}]
  %s18 = inlined_call_operand.vmem [shape: f32[32,32], index: 18, kind: input, shape index: {}]
  %s19 = inlined_call_operand.vmem [shape: f32[1,32], index: 19, kind: input, shape index: {}]
  %s20 = inlined_call_operand.vmem [shape: f32[32,32], index: 20, kind: input, shape index: {}]
  %s21 = inlined_call_operand.vmem [shape: f32[1,32], index: 21, kind: input, shape index: {}]
  %s22 = inlined_call_operand.vmem [shape: f32[1,32], index: 22, kind: input, shape index: {}]
  %s23 = inlined_call_operand.<no memory space> [shape: f32[1,1], index: 23, kind: input, shape index: {}]
  %s24 = inlined_call_operand.hbm [shape: f32[16,128], index: 24, kind: output, shape index: {0}]
  %s25 = inlined_call_operand.vmem [shape: f32[2,1], index: 25, kind: output, shape index: {1}]
  %s26 = inlined_call_operand.vmem [shape: f32[16,1], index: 26, kind: output, shape index: {2}]
  %27 = xla_tuple %s24, %s25, %s26
  %s28 = sld [smem:[#allocation0]]
  $region122: #{bert_csc_forward.1} parent=0
    _
  %s30 = ssub.s32 1, %s28
  %s31 = scalar_select 0, %s30, %s28
  %v32 = vstv %s23
  %33 = vst [vmem:[#allocation3] sm:$0x1] %v32
  $region1: #{bert_csc_forward.1} parent=0
    #allocation4 [shape = 'u8[8192]{0}', space=vmem, size = 0x2000, scoped, tag = 'output window, operand 0, single buffered']
    #allocation5 [shape = 's32[1]{0}', space=sflag, size = 0x4, scoped, tag = 'scoped memory for bert_csc_forward.1']
    %34 = vsyncpa [#allocation5], 0
    // Predicated region
    $region2: #{bert_csc_forward.1} parent=1 // pred_check
      _
    $region3: #{bert_csc_forward.1} parent=1 // pred_check_branch
      %36 = sbr.rel (0) target = $region5
    $region4: #{bert_csc_forward.1} parent=1 // pred_region
      _
    $region5: #{bert_csc_forward.1} parent=1 // pred_fallthru
      _
    // Predicated region
    $region6: #{bert_csc_forward.1} parent=1 // pred_check
      _
    $region7: #{bert_csc_forward.1} parent=1 // pred_check_branch
      %38 = sbr.rel (0) target = $region9
    $region8: #{bert_csc_forward.1} parent=1 // pred_region
      _
    $region9: #{bert_csc_forward.1} parent=1 // pred_fallthru
      _
    // Predicated region
    $region10: #{bert_csc_forward.1} parent=1 // pred_check
      _
    $region11: #{bert_csc_forward.1} parent=1 // pred_check_branch
      %40 = sbr.rel (0) target = $region13
    $region12: #{bert_csc_forward.1} parent=1 // pred_region
      _
    $region13: #{bert_csc_forward.1} parent=1 // pred_fallthru
      _
    // Predicated region
    $region14: #{bert_csc_forward.1} parent=1 // pred_check
      _
    $region15: #{bert_csc_forward.1} parent=1 // pred_check_branch
      %42 = sbr.rel (0) target = $region17
    $region16: #{bert_csc_forward.1} parent=1 // pred_region
      _
    $region17: #{bert_csc_forward.1} parent=1 // pred_fallthru
      _
    // Predicated region
    $region18: #{bert_csc_forward.1} parent=1 // pred_check
      _
    $region19: #{bert_csc_forward.1} parent=1 // pred_check_branch
      %44 = sbr.rel (0) target = $region21
    $region20: #{bert_csc_forward.1} parent=1 // pred_region
      _
    $region21: #{bert_csc_forward.1} parent=1 // pred_fallthru
      _
    // Predicated region
    $region22: #{bert_csc_forward.1} parent=1 // pred_check
      _
    $region23: #{bert_csc_forward.1} parent=1 // pred_check_branch
      %46 = sbr.rel (0) target = $region25
    $region24: #{bert_csc_forward.1} parent=1 // pred_region
      _
    $region25: #{bert_csc_forward.1} parent=1 // pred_fallthru
      _
    // Predicated region
    $region26: #{bert_csc_forward.1} parent=1 // pred_check
      _
    $region27: #{bert_csc_forward.1} parent=1 // pred_check_branch
      %48 = sbr.rel (0) target = $region29
    $region28: #{bert_csc_forward.1} parent=1 // pred_region
      _
    $region29: #{bert_csc_forward.1} parent=1 // pred_fallthru
      _
    // Predicated region
    $region30: #{bert_csc_forward.1} parent=1 // pred_check
      _
    $region31: #{bert_csc_forward.1} parent=1 // pred_check_branch
      %50 = sbr.rel (0) target = $region33
    $region32: #{bert_csc_forward.1} parent=1 // pred_region
      _
    $region33: #{bert_csc_forward.1} parent=1 // pred_fallthru
      _
    // Predicated region
    $region34: #{bert_csc_forward.1} parent=1 // pred_check
      _
    $region35: #{bert_csc_forward.1} parent=1 // pred_check_branch
      %52 = sbr.rel (0) target = $region37
    $region36: #{bert_csc_forward.1} parent=1 // pred_region
      _
    $region37: #{bert_csc_forward.1} parent=1 // pred_fallthru
      _
    // Predicated region
    $region38: #{bert_csc_forward.1} parent=1 // pred_check
      _
    $region39: #{bert_csc_forward.1} parent=1 // pred_check_branch
      %54 = sbr.rel (0) target = $region41
    $region40: #{bert_csc_forward.1} parent=1 // pred_region
      _
    $region41: #{bert_csc_forward.1} parent=1 // pred_fallthru
      _
    // Predicated region
    $region42: #{bert_csc_forward.1} parent=1 // pred_check
      _
    $region43: #{bert_csc_forward.1} parent=1 // pred_check_branch
      %56 = sbr.rel (0) target = $region45
    $region44: #{bert_csc_forward.1} parent=1 // pred_region
      _
    $region45: #{bert_csc_forward.1} parent=1 // pred_fallthru
      _
    // Predicated region
    $region46: #{bert_csc_forward.1} parent=1 // pred_check
      _
    $region47: #{bert_csc_forward.1} parent=1 // pred_check_branch
      %58 = sbr.rel (0) target = $region49
    $region48: #{bert_csc_forward.1} parent=1 // pred_region
      _
    $region49: #{bert_csc_forward.1} parent=1 // pred_fallthru
      _
    // Predicated region
    $region50: #{bert_csc_forward.1} parent=1 // pred_check
      _
    $region51: #{bert_csc_forward.1} parent=1 // pred_check_branch
      %60 = sbr.rel (0) target = $region53
    $region52: #{bert_csc_forward.1} parent=1 // pred_region
      _
    $region53: #{bert_csc_forward.1} parent=1 // pred_fallthru
      _
    // Predicated region
    $region54: #{bert_csc_forward.1} parent=1 // pred_check
      _
    $region55: #{bert_csc_forward.1} parent=1 // pred_check_branch
      %62 = sbr.rel (0) target = $region57
    $region56: #{bert_csc_forward.1} parent=1 // pred_region
      _
    $region57: #{bert_csc_forward.1} parent=1 // pred_fallthru
      _
    // Predicated region
    $region58: #{bert_csc_forward.1} parent=1 // pred_check
      _
    $region59: #{bert_csc_forward.1} parent=1 // pred_check_branch
      %64 = sbr.rel (0) target = $region61
    $region60: #{bert_csc_forward.1} parent=1 // pred_region
      _
    $region61: #{bert_csc_forward.1} parent=1 // pred_fallthru
      _
    // Predicated region
    $region62: #{bert_csc_forward.1} parent=1 // pred_check
      _
    $region63: #{bert_csc_forward.1} parent=1 // pred_check_branch
      %66 = sbr.rel (0) target = $region65
    $region64: #{bert_csc_forward.1} parent=1 // pred_region
      _
    $region65: #{bert_csc_forward.1} parent=1 // pred_fallthru
      _
    // Predicated region
    $region66: #{bert_csc_forward.1} parent=1 // pred_check
      _
    $region67: #{bert_csc_forward.1} parent=1 // pred_check_branch
      %68 = sbr.rel (0) target = $region69
    $region68: #{bert_csc_forward.1} parent=1 // pred_region
      _
    $region69: #{bert_csc_forward.1} parent=1 // pred_fallthru
      _
    // Predicated region
    $region70: #{bert_csc_forward.1} parent=1 // pred_check
      _
    $region71: #{bert_csc_forward.1} parent=1 // pred_check_branch
      %70 = sbr.rel (0) target = $region73
    $region72: #{bert_csc_forward.1} parent=1 // pred_region
      _
    $region73: #{bert_csc_forward.1} parent=1 // pred_fallthru
      _
    // Predicated region
    $region74: #{bert_csc_forward.1} parent=1 // pred_check
      _
    $region75: #{bert_csc_forward.1} parent=1 // pred_check_branch
      %72 = sbr.rel (0) target = $region77
    $region76: #{bert_csc_forward.1} parent=1 // pred_region
      _
    $region77: #{bert_csc_forward.1} parent=1 // pred_fallthru
      _
    // Predicated region
    $region78: #{bert_csc_forward.1} parent=1 // pred_check
      _
    $region79: #{bert_csc_forward.1} parent=1 // pred_check_branch
      %74 = sbr.rel (0) target = $region81
    $region80: #{bert_csc_forward.1} parent=1 // pred_region
      _
    $region81: #{bert_csc_forward.1} parent=1 // pred_fallthru
      _
    // Predicated region
    $region82: #{bert_csc_forward.1} parent=1 // pred_check
      _
    $region83: #{bert_csc_forward.1} parent=1 // pred_check_branch
      %76 = sbr.rel (0) target = $region85
    $region84: #{bert_csc_forward.1} parent=1 // pred_region
      _
    $region85: #{bert_csc_forward.1} parent=1 // pred_fallthru
      _
    // Predicated region
    $region86: #{bert_csc_forward.1} parent=1 // pred_check
      _
    $region87: #{bert_csc_forward.1} parent=1 // pred_check_branch
      %78 = sbr.rel (0) target = $region89
    $region88: #{bert_csc_forward.1} parent=1 // pred_region
      _
    $region89: #{bert_csc_forward.1} parent=1 // pred_fallthru
      _
    // Predicated region
    $region90: #{bert_csc_forward.1} parent=1 // pred_check
      _
    $region91: #{bert_csc_forward.1} parent=1 // pred_check_branch
      %80 = sbr.rel (0) target = $region93
    $region92: #{bert_csc_forward.1} parent=1 // pred_region
      _
    $region93: #{bert_csc_forward.1} parent=1 // pred_fallthru
      _
    // Predicated region
    $region94: #{bert_csc_forward.1} parent=1 // pred_check
      _
    $region95: #{bert_csc_forward.1} parent=1 // pred_check_branch
      %82 = sbr.rel (0) target = $region97
    $region96: #{bert_csc_forward.1} parent=1 // pred_region
      _
    $region97: #{bert_csc_forward.1} parent=1 // pred_fallthru
      _
    %v83 = vld [vmem:[%s0] sm:$0xff]
    %v84 = vld [vmem:[%s0 + $0x8] sm:$0xff]
    %v85 = vld [vmem:[%s2] sm:$0x1]
    %v86 = vld [vmem:[%s3] sm:$0x1]
    %vm87 = vcmask 261120
    %v88 = vsel %vm87, %v83, 0.0
    %89 = vadd.xlane.f32.xlu0 %v88
    %v90 = vpop.xlane.xlu0 %89
    %v91 = vsel %vm87, %v84, 0.0
    %92 = vadd.xlane.f32.xlu0 %v91
    %v93 = vpop.xlane.xlu0 %92
    %v94 = vrcp.pop 32.0
    %v95 = vmul.f32 32.0, %v94
    %v96 = vsub.f32 1.0, %v95
    %v97 = vmul.f32 %v94, %v96
    %v98 = vadd.f32 %v94, %v97
    %vm99 = vweird.f32 %v94
    %v100 = vsel %vm99, %v94, %v98
    %v101 = vmul.f32 %v90, %v100
    %v102 = vmul.f32 %v93, %v100
    %v103 = vsub.f32 %v83, %v101
    %v104 = vsub.f32 %v84, %v102
    %v105 = vmul.f32 %v103, %v103
    %v106 = vmul.f32 %v104, %v104
    %v107 = vsel %vm87, %v105, 0.0
    %108 = vadd.xlane.f32.xlu0 %v107
    %v109 = vpop.xlane.xlu0 %108
    %v110 = vsel %vm87, %v106, 0.0
    %111 = vadd.xlane.f32.xlu0 %v110
    %v112 = vpop.xlane.xlu0 %111
    %v113 = vmul.f32 %v109, %v100
    %v114 = vmul.f32 %v112, %v100
    %v115 = vadd.f32 %v113, 1e-12
    %v116 = vadd.f32 %v114, 1e-12
    %v117 = vrsqrt.pop %v115
    %v118 = vmul.f32 %v117, %v115
    %v119 = vmul.f32 %v118, %v117
    %v120 = vmul.f32 0.5, %v119
    %v121 = vsub.f32 1.5, %v120
    %v122 = vmul.f32 %v117, %v121
    %vm123 = vweird.f32 %v115
    %vm124 = vweird.f32 %v117
    %vm125 = vmor %vm123, %vm124
    %v126 = vsel %vm125, %v117, %v122
    %v127 = vrsqrt.pop %v116
    %v128 = vmul.f32 %v127, %v116
    %v129 = vmul.f32 %v128, %v127
    %v130 = vmul.f32 0.5, %v129
    %v131 = vsub.f32 1.5, %v130
    %v132 = vmul.f32 %v127, %v131
    %vm133 = vweird.f32 %v116
    %vm134 = vweird.f32 %v127
    %vm135 = vmor %vm133, %vm134
    %v136 = vsel %vm135, %v127, %v132
    %v137 = vmul.f32 %v103, %v126
    %v138 = vmul.f32 %v104, %v136
    %v140 = vperm.slane %v85, 0
    %v142 = vmul.f32 %v137, %v140
    %v143 = vmul.f32 %v138, %v140
    %v145 = vperm.slane %v86, 0
    %v147 = vadd.f32 %v142, %v145
    %v148 = vadd.f32 %v143, %v145
    %v149 = vld [vmem:[%s1] sm:$0x3]
    %v150 = vsub.f32 1.0, %v149
    %v151 = vmul.f32 %v150, -10000.0
    %v152 = vld [vmem:[%s4] sm:$0xff]
    %v153 = vld [vmem:[%s4 + $0x8] sm:$0xff]
    %v154 = vld [vmem:[%s4 + $0x10] sm:$0xff]
    %v155 = vld [vmem:[%s4 + $0x18] sm:$0xff]
    %v156 = vld [vmem:[%s5] sm:$0x1]
    %v158 = vperm.slane %v156, 0
    %v161 = vsel %vm87, %v147, 0
    %v164 = vsel %vm87, %v148, 0
    %166 = vmatpush.msra.mxu0 0.0
    %167 = vmatpush.msra.mxu0 0.0
    %168 = vmatpush.msra.mxu0 0.0
    %169 = vmatpush.msra.mxu0 0.0
    %170 = vmatpush.msra.mxu0 0.0
    %171 = vmatpush.msra.mxu0 0.0
    %172 = vmatpush.msra.mxu0 0.0
    %173 = vmatpush.msra.mxu0 0.0
    %174 = vmatpush.msra.mxu0 0.0
    %175 = vmatpush.msra.mxu0 0.0
    %176 = vmatpush.msra.mxu0 0.0
    %177 = vmatpush.msra.mxu0 0.0
    %178 = vmatpush.msra.mxu0 %v155
    %179 = vmatpush.msra.mxu0 %v154
    %180 = vmatpush.msra.mxu0 %v153
    %181 = vmatpush.msra.mxu0 %v152
    %182 = vmatmul.f32.gmra.mxu0 %v161
    %v183 = vpop.f32.mrf.mxu0
    %v184 = vadd.f32 %v158, %v183
    %185 = vmatmul.f32.gmra.mxu0 %v164
    %v186 = vpop.f32.mrf.mxu0
    %v187 = vadd.f32 %v158, %v186
    %188 = vdwg.mxu0
    %190 = vrot.lane.b32.xlu0 %v184, 96
    %v191 = vpop.permute.xlu0 %190
    %vm192 = vcmask 130048
    %v193 = vsel %vm192, %v184, 0
    %v195 = vsel %vm192, %v191, 0
    %197 = vmatpush.xpose.msra.mxu0 0.0
    %198 = vmatpush.xpose.msra.mxu0 0.0
    %199 = vmatpush.xpose.msra.mxu0 0.0
    %200 = vmatpush.xpose.msra.mxu0 0.0
    %201 = vmatpush.xpose.msra.mxu0 0.0
    %202 = vmatpush.xpose.msra.mxu0 0.0
    %203 = vmatpush.xpose.msra.mxu0 0.0
    %204 = vmatpush.xpose.msra.mxu0 0.0
    %205 = vmatpush.xpose.msra.mxu0 0.0
    %206 = vmatpush.xpose.msra.mxu0 0.0
    %207 = vmatpush.xpose.msra.mxu0 0.0
    %208 = vmatpush.xpose.msra.mxu0 0.0
    %209 = vmatpush.xpose.msra.mxu0 0.0
    %210 = vmatpush.xpose.msra.mxu0 0.0
    %211 = vmatpush.xpose.msra.mxu0 0.0
    %212 = vmatpush.xpose.msra.mxu0 %v195
    %213 = vmatmul.f32.gmra.mxu0 %v193
    %v214 = vpop.f32.mrf.mxu0
    %v215 = vadd.f32 0.0, %v214
    %216 = vdwg.mxu0
    %v217 = vmul.f32 %v215, 0.25
    %v218 = vperm.slane %v151, 0
    %v219 = vadd.f32 %v217, %v218
    %vm220 = vcmask 64512
    %v221 = vsel %vm220, %v219, -inf
    %222 = vmax.xlane.f32.xlu0 %v221
    %v223 = vpop.xlane.xlu0 %222
    %v224 = vsub.f32 %v219, %v223
    %v225 = vmul.f32 %v224, 1.442695
    %v226 = vpow.pop %v225
    %v227 = vsel %vm220, %v226, 0.0
    %228 = vadd.xlane.f32.xlu0 %v227
    %v229 = vpop.xlane.xlu0 %228
    %v230 = vrcp.pop %v229
    %v231 = vmul.f32 %v229, %v230
    %v232 = vsub.f32 1.0, %v231
    %v233 = vmul.f32 %v230, %v232
    %v234 = vadd.f32 %v230, %v233
    %vm235 = vweird.f32 %v229
    %vm236 = vweird.f32 %v230
    %vm237 = vmor %vm235, %vm236
    %v238 = vsel %vm237, %v230, %v234
    %v239 = vand.u32 2147483647, %v229
    %vm240 = vcmp.eq.f32.partialorder %v239, 8.507059e+37
    %v241 = vand.u32 %v229, 2147483648
    %v242 = vor.u32 1.1754944e-38, %v241
    %v243 = vsel %vm240, %v242, %v238
    %v244 = vmul.f32 %v226, %v243
    %245 = vrot.lane.b32.xlu0 %v184, 64
    %v246 = vpop.permute.xlu0 %245
    %v249 = vsel %vm220, %v244, 0
    %251 = vmatpush.msra.mxu0 0.0
    %252 = vmatpush.msra.mxu0 0.0
    %253 = vmatpush.msra.mxu0 0.0
    %254 = vmatpush.msra.mxu0 0.0
    %255 = vmatpush.msra.mxu0 0.0
    %256 = vmatpush.msra.mxu0 0.0
    %257 = vmatpush.msra.mxu0 0.0
    %258 = vmatpush.msra.mxu0 0.0
    %259 = vmatpush.msra.mxu0 0.0
    %260 = vmatpush.msra.mxu0 0.0
    %261 = vmatpush.msra.mxu0 0.0
    %262 = vmatpush.msra.mxu0 0.0
    %263 = vmatpush.msra.mxu0 0.0
    %264 = vmatpush.msra.mxu0 0.0
    %265 = vmatpush.msra.mxu0 0.0
    %266 = vmatpush.msra.mxu0 %v246
    %267 = vmatmul.f32.gmra.mxu0 %v249
    %v268 = vpop.f32.mrf.mxu0
    %v269 = vadd.f32 0.0, %v268
    %270 = vdwg.mxu0
    %271 = vst.msk [vmem:[#allocation2] sm:$0xff] %vm192, %v269
    %272 = vrot.lane.b32.xlu0 %v184, 112
    %v273 = vpop.permute.xlu0 %272
    %274 = vrot.lane.b32.xlu0 %v184, 80
    %v275 = vpop.permute.xlu0 %274
    %v276 = vsel %vm192, %v273, 0
    %v278 = vsel %vm192, %v275, 0
    %280 = vmatpush.xpose.msra.mxu0 0.0
    %281 = vmatpush.xpose.msra.mxu0 0.0
    %282 = vmatpush.xpose.msra.mxu0 0.0
    %283 = vmatpush.xpose.msra.mxu0 0.0
    %284 = vmatpush.xpose.msra.mxu0 0.0
    %285 = vmatpush.xpose.msra.mxu0 0.0
    %286 = vmatpush.xpose.msra.mxu0 0.0
    %287 = vmatpush.xpose.msra.mxu0 0.0
    %288 = vmatpush.xpose.msra.mxu0 0.0
    %289 = vmatpush.xpose.msra.mxu0 0.0
    %290 = vmatpush.xpose.msra.mxu0 0.0
    %291 = vmatpush.xpose.msra.mxu0 0.0
    %292 = vmatpush.xpose.msra.mxu0 0.0
    %293 = vmatpush.xpose.msra.mxu0 0.0
    %294 = vmatpush.xpose.msra.mxu0 0.0
    %295 = vmatpush.xpose.msra.mxu0 %v278
    %296 = vmatmul.f32.gmra.mxu0 %v276
    %v297 = vpop.f32.mrf.mxu0
    %v298 = vadd.f32 0.0, %v297
    %299 = vdwg.mxu0
    %v300 = vmul.f32 %v298, 0.25
    %v301 = vadd.f32 %v300, %v218
    %v302 = vsel %vm220, %v301, -inf
    %303 = vmax.xlane.f32.xlu0 %v302
    %v304 = vpop.xlane.xlu0 %303
    %v305 = vsub.f32 %v301, %v304
    %v306 = vmul.f32 %v305, 1.442695
    %v307 = vpow.pop %v306
    %v308 = vsel %vm220, %v307, 0.0
    %309 = vadd.xlane.f32.xlu0 %v308
    %v310 = vpop.xlane.xlu0 %309
    %v311 = vrcp.pop %v310
    %v312 = vmul.f32 %v310, %v311
    %v313 = vsub.f32 1.0, %v312
    %v314 = vmul.f32 %v311, %v313
    %v315 = vadd.f32 %v311, %v314
    %vm316 = vweird.f32 %v310
    %vm317 = vweird.f32 %v311
    %vm318 = vmor %vm316, %vm317
    %v319 = vsel %vm318, %v311, %v315
    %v320 = vand.u32 2147483647, %v310
    %vm321 = vcmp.eq.f32.partialorder %v320, 8.507059e+37
    %v322 = vand.u32 %v310, 2147483648
    %v323 = vor.u32 1.1754944e-38, %v322
    %v324 = vsel %vm321, %v323, %v319
    %v325 = vmul.f32 %v307, %v324
    %326 = vrot.lane.b32.xlu0 %v184, 48
    %v327 = vpop.permute.xlu0 %326
    %v330 = vsel %vm220, %v325, 0
    %332 = vmatpush.msra.mxu0 0.0
    %333 = vmatpush.msra.mxu0 0.0
    %334 = vmatpush.msra.mxu0 0.0
    %335 = vmatpush.msra.mxu0 0.0
    %336 = vmatpush.msra.mxu0 0.0
    %337 = vmatpush.msra.mxu0 0.0
    %338 = vmatpush.msra.mxu0 0.0
    %339 = vmatpush.msra.mxu0 0.0
    %340 = vmatpush.msra.mxu0 0.0
    %341 = vmatpush.msra.mxu0 0.0
    %342 = vmatpush.msra.mxu0 0.0
    %343 = vmatpush.msra.mxu0 0.0
    %344 = vmatpush.msra.mxu0 0.0
    %345 = vmatpush.msra.mxu0 0.0
    %346 = vmatpush.msra.mxu0 0.0
    %347 = vmatpush.msra.mxu0 %v327
    %348 = vmatmul.f32.gmra.mxu0 %v330
    %v349 = vpop.f32.mrf.mxu0
    %v350 = vadd.f32 0.0, %v349
    %351 = vdwg.mxu0
    %353 = vrot.lane.b32.xlu0 %v350, 16
    %v354 = vpop.permute.xlu0 %353
    %vm356 = vcmask 261248
    %357 = vst.msk [vmem:[#allocation2] sm:$0xff] %vm356, %v354
    %359 = vrot.lane.b32.xlu0 %v187, 96
    %v360 = vpop.permute.xlu0 %359
    %v361 = vsel %vm192, %v187, 0
    %v363 = vsel %vm192, %v360, 0
    %365 = vmatpush.xpose.msra.mxu0 0.0
    %366 = vmatpush.xpose.msra.mxu0 0.0
    %367 = vmatpush.xpose.msra.mxu0 0.0
    %368 = vmatpush.xpose.msra.mxu0 0.0
    %369 = vmatpush.xpose.msra.mxu0 0.0
    %370 = vmatpush.xpose.msra.mxu0 0.0
    %371 = vmatpush.xpose.msra.mxu0 0.0
    %372 = vmatpush.xpose.msra.mxu0 0.0
    %373 = vmatpush.xpose.msra.mxu0 0.0
    %374 = vmatpush.xpose.msra.mxu0 0.0
    %375 = vmatpush.xpose.msra.mxu0 0.0
    %376 = vmatpush.xpose.msra.mxu0 0.0
    %377 = vmatpush.xpose.msra.mxu0 0.0
    %378 = vmatpush.xpose.msra.mxu0 0.0
    %379 = vmatpush.xpose.msra.mxu0 0.0
    %380 = vmatpush.xpose.msra.mxu0 %v363
    %381 = vmatmul.f32.gmra.mxu0 %v361
    %v382 = vpop.f32.mrf.mxu0
    %v383 = vadd.f32 0.0, %v382
    %384 = vdwg.mxu0
    %v385 = vmul.f32 %v383, 0.25
    %v386 = vperm.slane %v151, 1
    %v387 = vadd.f32 %v385, %v386
    %v388 = vsel %vm220, %v387, -inf
    %389 = vmax.xlane.f32.xlu0 %v388
    %v390 = vpop.xlane.xlu0 %389
    %v391 = vsub.f32 %v387, %v390
    %v392 = vmul.f32 %v391, 1.442695
    %v393 = vpow.pop %v392
    %v394 = vsel %vm220, %v393, 0.0
    %395 = vadd.xlane.f32.xlu0 %v394
    %v396 = vpop.xlane.xlu0 %395
    %v397 = vrcp.pop %v396
    %v398 = vmul.f32 %v396, %v397
    %v399 = vsub.f32 1.0, %v398
    %v400 = vmul.f32 %v397, %v399
    %v401 = vadd.f32 %v397, %v400
    %vm402 = vweird.f32 %v396
    %vm403 = vweird.f32 %v397
    %vm404 = vmor %vm402, %vm403
    %v405 = vsel %vm404, %v397, %v401
    %v406 = vand.u32 2147483647, %v396
    %vm407 = vcmp.eq.f32.partialorder %v406, 8.507059e+37
    %v408 = vand.u32 %v396, 2147483648
    %v409 = vor.u32 1.1754944e-38, %v408
    %v410 = vsel %vm407, %v409, %v405
    %v411 = vmul.f32 %v393, %v410
    %412 = vrot.lane.b32.xlu0 %v187, 64
    %v413 = vpop.permute.xlu0 %412
    %v416 = vsel %vm220, %v411, 0
    %418 = vmatpush.msra.mxu0 0.0
    %419 = vmatpush.msra.mxu0 0.0
    %420 = vmatpush.msra.mxu0 0.0
    %421 = vmatpush.msra.mxu0 0.0
    %422 = vmatpush.msra.mxu0 0.0
    %423 = vmatpush.msra.mxu0 0.0
    %424 = vmatpush.msra.mxu0 0.0
    %425 = vmatpush.msra.mxu0 0.0
    %426 = vmatpush.msra.mxu0 0.0
    %427 = vmatpush.msra.mxu0 0.0
    %428 = vmatpush.msra.mxu0 0.0
    %429 = vmatpush.msra.mxu0 0.0
    %430 = vmatpush.msra.mxu0 0.0
    %431 = vmatpush.msra.mxu0 0.0
    %432 = vmatpush.msra.mxu0 0.0
    %433 = vmatpush.msra.mxu0 %v413
    %434 = vmatmul.f32.gmra.mxu0 %v416
    %v435 = vpop.f32.mrf.mxu0
    %v436 = vadd.f32 0.0, %v435
    %437 = vdwg.mxu0
    %438 = vst.msk [vmem:[#allocation2 + $0x8] sm:$0xff] %vm192, %v436
    %439 = vrot.lane.b32.xlu0 %v187, 112
    %v440 = vpop.permute.xlu0 %439
    %441 = vrot.lane.b32.xlu0 %v187, 80
    %v442 = vpop.permute.xlu0 %441
    %v443 = vsel %vm192, %v440, 0
    %v445 = vsel %vm192, %v442, 0
    %447 = vmatpush.xpose.msra.mxu0 0.0
    %448 = vmatpush.xpose.msra.mxu0 0.0
    %449 = vmatpush.xpose.msra.mxu0 0.0
    %450 = vmatpush.xpose.msra.mxu0 0.0
    %451 = vmatpush.xpose.msra.mxu0 0.0
    %452 = vmatpush.xpose.msra.mxu0 0.0
    %453 = vmatpush.xpose.msra.mxu0 0.0
    %454 = vmatpush.xpose.msra.mxu0 0.0
    %455 = vmatpush.xpose.msra.mxu0 0.0
    %456 = vmatpush.xpose.msra.mxu0 0.0
    %457 = vmatpush.xpose.msra.mxu0 0.0
    %458 = vmatpush.xpose.msra.mxu0 0.0
    %459 = vmatpush.xpose.msra.mxu0 0.0
    %460 = vmatpush.xpose.msra.mxu0 0.0
    %461 = vmatpush.xpose.msra.mxu0 0.0
    %462 = vmatpush.xpose.msra.mxu0 %v445
    %463 = vmatmul.f32.gmra.mxu0 %v443
    %v464 = vpop.f32.mrf.mxu0
    %v465 = vadd.f32 0.0, %v464
    %466 = vdwg.mxu0
    %v467 = vmul.f32 %v465, 0.25
    %v468 = vadd.f32 %v467, %v386
    %v469 = vsel %vm220, %v468, -inf
    %470 = vmax.xlane.f32.xlu0 %v469
    %v471 = vpop.xlane.xlu0 %470
    %v472 = vsub.f32 %v468, %v471
    %v473 = vmul.f32 %v472, 1.442695
    %v474 = vpow.pop %v473
    %v475 = vsel %vm220, %v474, 0.0
    %476 = vadd.xlane.f32.xlu0 %v475
    %v477 = vpop.xlane.xlu0 %476
    %v478 = vrcp.pop %v477
    %v479 = vmul.f32 %v477, %v478
    %v480 = vsub.f32 1.0, %v479
    %v481 = vmul.f32 %v478, %v480
    %v482 = vadd.f32 %v478, %v481
    %vm483 = vweird.f32 %v477
    %vm484 = vweird.f32 %v478
    %vm485 = vmor %vm483, %vm484
    %v486 = vsel %vm485, %v478, %v482
    %v487 = vand.u32 2147483647, %v477
    %vm488 = vcmp.eq.f32.partialorder %v487, 8.507059e+37
    %v489 = vand.u32 %v477, 2147483648
    %v490 = vor.u32 1.1754944e-38, %v489
    %v491 = vsel %vm488, %v490, %v486
    %v492 = vmul.f32 %v474, %v491
    %493 = vrot.lane.b32.xlu0 %v187, 48
    %v494 = vpop.permute.xlu0 %493
    %v497 = vsel %vm220, %v492, 0
    %499 = vmatpush.msra.mxu0 0.0
    %500 = vmatpush.msra.mxu0 0.0
    %501 = vmatpush.msra.mxu0 0.0
    %502 = vmatpush.msra.mxu0 0.0
    %503 = vmatpush.msra.mxu0 0.0
    %504 = vmatpush.msra.mxu0 0.0
    %505 = vmatpush.msra.mxu0 0.0
    %506 = vmatpush.msra.mxu0 0.0
    %507 = vmatpush.msra.mxu0 0.0
    %508 = vmatpush.msra.mxu0 0.0
    %509 = vmatpush.msra.mxu0 0.0
    %510 = vmatpush.msra.mxu0 0.0
    %511 = vmatpush.msra.mxu0 0.0
    %512 = vmatpush.msra.mxu0 0.0
    %513 = vmatpush.msra.mxu0 0.0
    %514 = vmatpush.msra.mxu0 %v494
    %515 = vmatmul.f32.gmra.mxu0 %v497
    %v516 = vpop.f32.mrf.mxu0
    %v517 = vadd.f32 0.0, %v516
    %518 = vdwg.mxu0
    %520 = vrot.lane.b32.xlu0 %v517, 16
    %v521 = vpop.permute.xlu0 %520
    %523 = vst.msk [vmem:[#allocation2 + $0x8] sm:$0xff] %vm356, %v521
    %v524 = vld [vmem:[#allocation2] sm:$0xff]
    %v525 = vld [vmem:[#allocation2 + $0x8] sm:$0xff]
    %v526 = vld [vmem:[%s6] sm:$0xff]
    %v527 = vld [vmem:[%s6 + $0x8] sm:$0xff]
    %v528 = vld [vmem:[%s6 + $0x10] sm:$0xff]
    %v529 = vld [vmem:[%s6 + $0x18] sm:$0xff]
    %v530 = vld [vmem:[%s7] sm:$0x1]
    %v532 = vperm.slane %v530, 0
    %v535 = vsel %vm87, %v524, 0
    %v538 = vsel %vm87, %v525, 0
    %540 = vmatpush.msra.mxu0 0.0
    %541 = vmatpush.msra.mxu0 0.0
    %542 = vmatpush.msra.mxu0 0.0
    %543 = vmatpush.msra.mxu0 0.0
    %544 = vmatpush.msra.mxu0 0.0
    %545 = vmatpush.msra.mxu0 0.0
    %546 = vmatpush.msra.mxu0 0.0
    %547 = vmatpush.msra.mxu0 0.0
    %548 = vmatpush.msra.mxu0 0.0
    %549 = vmatpush.msra.mxu0 0.0
    %550 = vmatpush.msra.mxu0 0.0
    %551 = vmatpush.msra.mxu0 0.0
    %552 = vmatpush.msra.mxu0 %v529
    %553 = vmatpush.msra.mxu0 %v528
    %554 = vmatpush.msra.mxu0 %v527
    %555 = vmatpush.msra.mxu0 %v526
    %556 = vmatmul.f32.gmra.mxu0 %v535
    %v557 = vpop.f32.mrf.mxu0
    %v558 = vadd.f32 %v532, %v557
    %559 = vmatmul.f32.gmra.mxu0 %v538
    %v560 = vpop.f32.mrf.mxu0
    %v561 = vadd.f32 %v532, %v560
    %562 = vdwg.mxu0
    %v563 = vadd.f32 %v147, %v558
    %v564 = vadd.f32 %v148, %v561
    %v565 = vld [vmem:[%s8] sm:$0x1]
    %v566 = vld [vmem:[%s9] sm:$0x1]
    %v567 = vsel %vm87, %v563, 0.0
    %568 = vadd.xlane.f32.xlu0 %v567
    %v569 = vpop.xlane.xlu0 %568
    %v570 = vsel %vm87, %v564, 0.0
    %571 = vadd.xlane.f32.xlu0 %v570
    %v572 = vpop.xlane.xlu0 %571
    %v573 = vmul.f32 %v569, %v100
    %v574 = vmul.f32 %v572, %v100
    %v575 = vsub.f32 %v563, %v573
    %v576 = vsub.f32 %v564, %v574
    %v577 = vmul.f32 %v575, %v575
    %v578 = vmul.f32 %v576, %v576
    %v579 = vsel %vm87, %v577, 0.0
    %580 = vadd.xlane.f32.xlu0 %v579
    %v581 = vpop.xlane.xlu0 %580
    %v582 = vsel %vm87, %v578, 0.0
    %583 = vadd.xlane.f32.xlu0 %v582
    %v584 = vpop.xlane.xlu0 %583
    %v585 = vmul.f32 %v581, %v100
    %v586 = vmul.f32 %v584, %v100
    %v587 = vadd.f32 %v585, 1e-12
    %v588 = vadd.f32 %v586, 1e-12
    %v589 = vrsqrt.pop %v587
    %v590 = vmul.f32 %v589, %v587
    %v591 = vmul.f32 %v590, %v589
    %v592 = vmul.f32 0.5, %v591
    %v593 = vsub.f32 1.5, %v592
    %v594 = vmul.f32 %v589, %v593
    %vm595 = vweird.f32 %v587
    %vm596 = vweird.f32 %v589
    %vm597 = vmor %vm595, %vm596
    %v598 = vsel %vm597, %v589, %v594
    %v599 = vrsqrt.pop %v588
    %v600 = vmul.f32 %v599, %v588
    %v601 = vmul.f32 %v600, %v599
    %v602 = vmul.f32 0.5, %v601
    %v603 = vsub.f32 1.5, %v602
    %v604 = vmul.f32 %v599, %v603
    %vm605 = vweird.f32 %v588
    %vm606 = vweird.f32 %v599
    %vm607 = vmor %vm605, %vm606
    %v608 = vsel %vm607, %v599, %v604
    %v609 = vmul.f32 %v575, %v598
    %v610 = vmul.f32 %v576, %v608
    %v612 = vperm.slane %v565, 0
    %v614 = vmul.f32 %v609, %v612
    %v615 = vmul.f32 %v610, %v612
    %v617 = vperm.slane %v566, 0
    %v619 = vadd.f32 %v614, %v617
    %v620 = vadd.f32 %v615, %v617
    %v621 = vld [vmem:[%s10] sm:$0xff]
    %v622 = vld [vmem:[%s10 + $0x8] sm:$0xff]
    %v623 = vld [vmem:[%s10 + $0x10] sm:$0xff]
    %v624 = vld [vmem:[%s10 + $0x18] sm:$0xff]
    %v625 = vld [vmem:[%s11] sm:$0x1]
    %v627 = vperm.slane %v625, 0
    %v630 = vsel %vm87, %v619, 0
    %v633 = vsel %vm87, %v620, 0
    %635 = vmatpush.msra.mxu0 0.0
    %636 = vmatpush.msra.mxu0 0.0
    %637 = vmatpush.msra.mxu0 0.0
    %638 = vmatpush.msra.mxu0 0.0
    %639 = vmatpush.msra.mxu0 0.0
    %640 = vmatpush.msra.mxu0 0.0
    %641 = vmatpush.msra.mxu0 0.0
    %642 = vmatpush.msra.mxu0 0.0
    %643 = vmatpush.msra.mxu0 0.0
    %644 = vmatpush.msra.mxu0 0.0
    %645 = vmatpush.msra.mxu0 0.0
    %646 = vmatpush.msra.mxu0 0.0
    %647 = vmatpush.msra.mxu0 %v624
    %648 = vmatpush.msra.mxu0 %v623
    %649 = vmatpush.msra.mxu0 %v622
    %650 = vmatpush.msra.mxu0 %v621
    %651 = vmatmul.f32.gmra.mxu0 %v630
    %v652 = vpop.f32.mrf.mxu0
    %v653 = vadd.f32 %v627, %v652
    %654 = vmatmul.f32.gmra.mxu0 %v633
    %v655 = vpop.f32.mrf.mxu0
    %v656 = vadd.f32 %v627, %v655
    %657 = vdwg.mxu0
    %v658 = vmul.f32 %v653, %v653
    %v659 = vmul.f32 %v656, %v656
    %v660 = vmul.f32 %v653, %v658
    %v661 = vmul.f32 %v656, %v659
    %v662 = vmul.f32 %v660, 0.044715
    %v663 = vmul.f32 %v661, 0.044715
    %v664 = vadd.f32 %v653, %v662
    %v665 = vadd.f32 %v656, %v663
    %v666 = vmul.f32 %v664, 0.7978846
    %v667 = vmul.f32 %v665, 0.7978846
    %v668 = vtanh.pop %v666
    %v669 = vtanh.pop %v667
    %v670 = vadd.f32 %v668, 1.0
    %v671 = vadd.f32 %v669, 1.0
    %v672 = vmul.f32 %v670, 0.5
    %v673 = vmul.f32 %v671, 0.5
    %v674 = vmul.f32 %v653, %v672
    %v675 = vmul.f32 %v656, %v673
    %v676 = vld [vmem:[%s12] sm:$0xff]
    %v677 = vld [vmem:[%s12 + $0x8] sm:$0xff]
    %v678 = vld [vmem:[%s12 + $0x10] sm:$0xff]
    %v679 = vld [vmem:[%s12 + $0x18] sm:$0xff]
    %v680 = vld [vmem:[%s12 + $0x20] sm:$0xff]
    %v681 = vld [vmem:[%s12 + $0x28] sm:$0xff]
    %v682 = vld [vmem:[%s12 + $0x30] sm:$0xff]
    %v683 = vld [vmem:[%s12 + $0x38] sm:$0xff]
    %v684 = vld [vmem:[%s13] sm:$0x1]
    %v686 = vperm.slane %v684, 0
    %vm688 = vcmask 523264
    %v690 = vsel %vm688, %v674, 0
    %v693 = vsel %vm688, %v675, 0
    %695 = vmatpush.msra.mxu0 0.0
    %696 = vmatpush.msra.mxu0 0.0
    %697 = vmatpush.msra.mxu0 0.0
    %698 = vmatpush.msra.mxu0 0.0
    %699 = vmatpush.msra.mxu0 0.0
    %700 = vmatpush.msra.mxu0 0.0
    %701 = vmatpush.msra.mxu0 0.0
    %702 = vmatpush.msra.mxu0 0.0
    %703 = vmatpush.msra.mxu0 %v683
    %704 = vmatpush.msra.mxu0 %v682
    %705 = vmatpush.msra.mxu0 %v681
    %706 = vmatpush.msra.mxu0 %v680
    %707 = vmatpush.msra.mxu0 %v679
    %708 = vmatpush.msra.mxu0 %v678
    %709 = vmatpush.msra.mxu0 %v677
    %710 = vmatpush.msra.mxu0 %v676
    %711 = vmatmul.f32.gmra.mxu0 %v690
    %v712 = vpop.f32.mrf.mxu0
    %v713 = vadd.f32 %v686, %v712
    %714 = vmatmul.f32.gmra.mxu0 %v693
    %v715 = vpop.f32.mrf.mxu0
    %v716 = vadd.f32 %v686, %v715
    %717 = vdwg.mxu0
    %v718 = vadd.f32 %v619, %v713
    %v719 = vadd.f32 %v620, %v716
    %v720 = vld [vmem:[%s14] sm:$0x1]
    %v721 = vld [vmem:[%s15] sm:$0x1]
    %v722 = vsel %vm87, %v718, 0.0
    %723 = vadd.xlane.f32.xlu0 %v722
    %v724 = vpop.xlane.xlu0 %723
    %v725 = vsel %vm87, %v719, 0.0
    %726 = vadd.xlane.f32.xlu0 %v725
    %v727 = vpop.xlane.xlu0 %726
    %v728 = vmul.f32 %v724, %v100
    %v729 = vmul.f32 %v727, %v100
    %v730 = vsub.f32 %v718, %v728
    %v731 = vsub.f32 %v719, %v729
    %v732 = vmul.f32 %v730, %v730
    %v733 = vmul.f32 %v731, %v731
    %v734 = vsel %vm87, %v732, 0.0
    %735 = vadd.xlane.f32.xlu0 %v734
    %v736 = vpop.xlane.xlu0 %735
    %v737 = vsel %vm87, %v733, 0.0
    %738 = vadd.xlane.f32.xlu0 %v737
    %v739 = vpop.xlane.xlu0 %738
    %v740 = vmul.f32 %v736, %v100
    %v741 = vmul.f32 %v739, %v100
    %v742 = vadd.f32 %v740, 1e-12
    %v743 = vadd.f32 %v741, 1e-12
    %v744 = vrsqrt.pop %v742
    %v745 = vmul.f32 %v744, %v742
    %v746 = vmul.f32 %v745, %v744
    %v747 = vmul.f32 0.5, %v746
    %v748 = vsub.f32 1.5, %v747
    %v749 = vmul.f32 %v744, %v748
    %vm750 = vweird.f32 %v742
    %vm751 = vweird.f32 %v744
    %vm752 = vmor %vm750, %vm751
    %v753 = vsel %vm752, %v744, %v749
    %v754 = vrsqrt.pop %v743
    %v755 = vmul.f32 %v754, %v743
    %v756 = vmul.f32 %v755, %v754
    %v757 = vmul.f32 0.5, %v756
    %v758 = vsub.f32 1.5, %v757
    %v759 = vmul.f32 %v754, %v758
    %vm760 = vweird.f32 %v743
    %vm761 = vweird.f32 %v754
    %vm762 = vmor %vm760, %vm761
    %v763 = vsel %vm762, %v754, %v759
    %v764 = vmul.f32 %v730, %v753
    %v765 = vmul.f32 %v731, %v763
    %v767 = vperm.slane %v720, 0
    %v769 = vmul.f32 %v764, %v767
    %v770 = vmul.f32 %v765, %v767
    %v772 = vperm.slane %v721, 0
    %v774 = vadd.f32 %v769, %v772
    %v775 = vadd.f32 %v770, %v772
    %s776 = scalar_lea.vmem %s4, 32
    %v777 = vld [vmem:[%s776] sm:$0xff]
    %v778 = vld [vmem:[%s776 + $0x8] sm:$0xff]
    %v779 = vld [vmem:[%s776 + $0x10] sm:$0xff]
    %v780 = vld [vmem:[%s776 + $0x18] sm:$0xff]
    %s781 = scalar_lea.vmem %s5, 1
    %v782 = vld [vmem:[%s781] sm:$0x1]
    %v784 = vperm.slane %v782, 0
    %v787 = vsel %vm87, %v774, 0
    %v790 = vsel %vm87, %v775, 0
    %792 = vmatpush.msra.mxu0 0.0
    %793 = vmatpush.msra.mxu0 0.0
    %794 = vmatpush.msra.mxu0 0.0
    %795 = vmatpush.msra.mxu0 0.0
    %796 = vmatpush.msra.mxu0 0.0
    %797 = vmatpush.msra.mxu0 0.0
    %798 = vmatpush.msra.mxu0 0.0
    %799 = vmatpush.msra.mxu0 0.0
    %800 = vmatpush.msra.mxu0 0.0
    %801 = vmatpush.msra.mxu0 0.0
    %802 = vmatpush.msra.mxu0 0.0
    %803 = vmatpush.msra.mxu0 0.0
    %804 = vmatpush.msra.mxu0 %v780
    %805 = vmatpush.msra.mxu0 %v779
    %806 = vmatpush.msra.mxu0 %v778
    %807 = vmatpush.msra.mxu0 %v777
    %808 = vmatmul.f32.gmra.mxu0 %v787
    %v809 = vpop.f32.mrf.mxu0
    %v810 = vadd.f32 %v784, %v809
    %811 = vmatmul.f32.gmra.mxu0 %v790
    %v812 = vpop.f32.mrf.mxu0
    %v813 = vadd.f32 %v784, %v812
    %814 = vdwg.mxu0
    %816 = vrot.lane.b32.xlu0 %v810, 96
    %v817 = vpop.permute.xlu0 %816
    %v818 = vsel %vm192, %v810, 0
    %v820 = vsel %vm192, %v817, 0
    %822 = vmatpush.xpose.msra.mxu0 0.0
    %823 = vmatpush.xpose.msra.mxu0 0.0
    %824 = vmatpush.xpose.msra.mxu0 0.0
    %825 = vmatpush.xpose.msra.mxu0 0.0
    %826 = vmatpush.xpose.msra.mxu0 0.0
    %827 = vmatpush.xpose.msra.mxu0 0.0
    %828 = vmatpush.xpose.msra.mxu0 0.0
    %829 = vmatpush.xpose.msra.mxu0 0.0
    %830 = vmatpush.xpose.msra.mxu0 0.0
    %831 = vmatpush.xpose.msra.mxu0 0.0
    %832 = vmatpush.xpose.msra.mxu0 0.0
    %833 = vmatpush.xpose.msra.mxu0 0.0
    %834 = vmatpush.xpose.msra.mxu0 0.0
    %835 = vmatpush.xpose.msra.mxu0 0.0
    %836 = vmatpush.xpose.msra.mxu0 0.0
    %837 = vmatpush.xpose.msra.mxu0 %v820
    %838 = vmatmul.f32.gmra.mxu0 %v818
    %v839 = vpop.f32.mrf.mxu0
    %v840 = vadd.f32 0.0, %v839
    %841 = vdwg.mxu0
    %v842 = vmul.f32 %v840, 0.25
    %v843 = vadd.f32 %v842, %v218
    %v844 = vsel %vm220, %v843, -inf
    %845 = vmax.xlane.f32.xlu0 %v844
    %v846 = vpop.xlane.xlu0 %845
    %v847 = vsub.f32 %v843, %v846
    %v848 = vmul.f32 %v847, 1.442695
    %v849 = vpow.pop %v848
    %v850 = vsel %vm220, %v849, 0.0
    %851 = vadd.xlane.f32.xlu0 %v850
    %v852 = vpop.xlane.xlu0 %851
    %v853 = vrcp.pop %v852
    %v854 = vmul.f32 %v852, %v853
    %v855 = vsub.f32 1.0, %v854
    %v856 = vmul.f32 %v853, %v855
    %v857 = vadd.f32 %v853, %v856
    %vm858 = vweird.f32 %v852
    %vm859 = vweird.f32 %v853
    %vm860 = vmor %vm858, %vm859
    %v861 = vsel %vm860, %v853, %v857
    %v862 = vand.u32 2147483647, %v852
    %vm863 = vcmp.eq.f32.partialorder %v862, 8.507059e+37
    %v864 = vand.u32 %v852, 2147483648
    %v865 = vor.u32 1.1754944e-38, %v864
    %v866 = vsel %vm863, %v865, %v861
    %v867 = vmul.f32 %v849, %v866
    %868 = vrot.lane.b32.xlu0 %v810, 64
    %v869 = vpop.permute.xlu0 %868
    %v872 = vsel %vm220, %v867, 0
    %874 = vmatpush.msra.mxu0 0.0
    %875 = vmatpush.msra.mxu0 0.0
    %876 = vmatpush.msra.mxu0 0.0
    %877 = vmatpush.msra.mxu0 0.0
    %878 = vmatpush.msra.mxu0 0.0
    %879 = vmatpush.msra.mxu0 0.0
    %880 = vmatpush.msra.mxu0 0.0
    %881 = vmatpush.msra.mxu0 0.0
    %882 = vmatpush.msra.mxu0 0.0
    %883 = vmatpush.msra.mxu0 0.0
    %884 = vmatpush.msra.mxu0 0.0
    %885 = vmatpush.msra.mxu0 0.0
    %886 = vmatpush.msra.mxu0 0.0
    %887 = vmatpush.msra.mxu0 0.0
    %888 = vmatpush.msra.mxu0 0.0
    %889 = vmatpush.msra.mxu0 %v869
    %890 = vmatmul.f32.gmra.mxu0 %v872
    %v891 = vpop.f32.mrf.mxu0
    %v892 = vadd.f32 0.0, %v891
    %893 = vdwg.mxu0
    %894 = vst.msk [vmem:[#allocation2] sm:$0xff] %vm192, %v892
    %895 = vrot.lane.b32.xlu0 %v810, 112
    %v896 = vpop.permute.xlu0 %895
    %897 = vrot.lane.b32.xlu0 %v810, 80
    %v898 = vpop.permute.xlu0 %897
    %v899 = vsel %vm192, %v896, 0
    %v901 = vsel %vm192, %v898, 0
    %903 = vmatpush.xpose.msra.mxu0 0.0
    %904 = vmatpush.xpose.msra.mxu0 0.0
    %905 = vmatpush.xpose.msra.mxu0 0.0
    %906 = vmatpush.xpose.msra.mxu0 0.0
    %907 = vmatpush.xpose.msra.mxu0 0.0
    %908 = vmatpush.xpose.msra.mxu0 0.0
    %909 = vmatpush.xpose.msra.mxu0 0.0
    %910 = vmatpush.xpose.msra.mxu0 0.0
    %911 = vmatpush.xpose.msra.mxu0 0.0
    %912 = vmatpush.xpose.msra.mxu0 0.0
    %913 = vmatpush.xpose.msra.mxu0 0.0
    %914 = vmatpush.xpose.msra.mxu0 0.0
    %915 = vmatpush.xpose.msra.mxu0 0.0
    %916 = vmatpush.xpose.msra.mxu0 0.0
    %917 = vmatpush.xpose.msra.mxu0 0.0
    %918 = vmatpush.xpose.msra.mxu0 %v901
    %919 = vmatmul.f32.gmra.mxu0 %v899
    %v920 = vpop.f32.mrf.mxu0
    %v921 = vadd.f32 0.0, %v920
    %922 = vdwg.mxu0
    %v923 = vmul.f32 %v921, 0.25
    %v924 = vadd.f32 %v923, %v218
    %v925 = vsel %vm220, %v924, -inf
    %926 = vmax.xlane.f32.xlu0 %v925
    %v927 = vpop.xlane.xlu0 %926
    %v928 = vsub.f32 %v924, %v927
    %v929 = vmul.f32 %v928, 1.442695
    %v930 = vpow.pop %v929
    %v931 = vsel %vm220, %v930, 0.0
    %932 = vadd.xlane.f32.xlu0 %v931
    %v933 = vpop.xlane.xlu0 %932
    %v934 = vrcp.pop %v933
    %v935 = vmul.f32 %v933, %v934
    %v936 = vsub.f32 1.0, %v935
    %v937 = vmul.f32 %v934, %v936
    %v938 = vadd.f32 %v934, %v937
    %vm939 = vweird.f32 %v933
    %vm940 = vweird.f32 %v934
    %vm941 = vmor %vm939, %vm940
    %v942 = vsel %vm941, %v934, %v938
    %v943 = vand.u32 2147483647, %v933
    %vm944 = vcmp.eq.f32.partialorder %v943, 8.507059e+37
    %v945 = vand.u32 %v933, 2147483648
    %v946 = vor.u32 1.1754944e-38, %v945
    %v947 = vsel %vm944, %v946, %v942
    %v948 = vmul.f32 %v930, %v947
    %949 = vrot.lane.b32.xlu0 %v810, 48
    %v950 = vpop.permute.xlu0 %949
    %v953 = vsel %vm220, %v948, 0
    %955 = vmatpush.msra.mxu0 0.0
    %956 = vmatpush.msra.mxu0 0.0
    %957 = vmatpush.msra.mxu0 0.0
    %958 = vmatpush.msra.mxu0 0.0
    %959 = vmatpush.msra.mxu0 0.0
    %960 = vmatpush.msra.mxu0 0.0
    %961 = vmatpush.msra.mxu0 0.0
    %962 = vmatpush.msra.mxu0 0.0
    %963 = vmatpush.msra.mxu0 0.0
    %964 = vmatpush.msra.mxu0 0.0
    %965 = vmatpush.msra.mxu0 0.0
    %966 = vmatpush.msra.mxu0 0.0
    %967 = vmatpush.msra.mxu0 0.0
    %968 = vmatpush.msra.mxu0 0.0
    %969 = vmatpush.msra.mxu0 0.0
    %970 = vmatpush.msra.mxu0 %v950
    %971 = vmatmul.f32.gmra.mxu0 %v953
    %v972 = vpop.f32.mrf.mxu0
    %v973 = vadd.f32 0.0, %v972
    %974 = vdwg.mxu0
    %976 = vrot.lane.b32.xlu0 %v973, 16
    %v977 = vpop.permute.xlu0 %976
    %979 = vst.msk [vmem:[#allocation2] sm:$0xff] %vm356, %v977
    %981 = vrot.lane.b32.xlu0 %v813, 96
    %v982 = vpop.permute.xlu0 %981
    %v983 = vsel %vm192, %v813, 0
    %v985 = vsel %vm192, %v982, 0
    %987 = vmatpush.xpose.msra.mxu0 0.0
    %988 = vmatpush.xpose.msra.mxu0 0.0
    %989 = vmatpush.xpose.msra.mxu0 0.0
    %990 = vmatpush.xpose.msra.mxu0 0.0
    %991 = vmatpush.xpose.msra.mxu0 0.0
    %992 = vmatpush.xpose.msra.mxu0 0.0
    %993 = vmatpush.xpose.msra.mxu0 0.0
    %994 = vmatpush.xpose.msra.mxu0 0.0
    %995 = vmatpush.xpose.msra.mxu0 0.0
    %996 = vmatpush.xpose.msra.mxu0 0.0
    %997 = vmatpush.xpose.msra.mxu0 0.0
    %998 = vmatpush.xpose.msra.mxu0 0.0
    %999 = vmatpush.xpose.msra.mxu0 0.0
    %1000 = vmatpush.xpose.msra.mxu0 0.0
    %1001 = vmatpush.xpose.msra.mxu0 0.0
    %1002 = vmatpush.xpose.msra.mxu0 %v985
    %1003 = vmatmul.f32.gmra.mxu0 %v983
    %v1004 = vpop.f32.mrf.mxu0
    %v1005 = vadd.f32 0.0, %v1004
    %1006 = vdwg.mxu0
    %v1007 = vmul.f32 %v1005, 0.25
    %v1008 = vadd.f32 %v1007, %v386
    %v1009 = vsel %vm220, %v1008, -inf
    %1010 = vmax.xlane.f32.xlu0 %v1009
    %v1011 = vpop.xlane.xlu0 %1010
    %v1012 = vsub.f32 %v1008, %v1011
    %v1013 = vmul.f32 %v1012, 1.442695
    %v1014 = vpow.pop %v1013
    %v1015 = vsel %vm220, %v1014, 0.0
    %1016 = vadd.xlane.f32.xlu0 %v1015
    %v1017 = vpop.xlane.xlu0 %1016
    %v1018 = vrcp.pop %v1017
    %v1019 = vmul.f32 %v1017, %v1018
    %v1020 = vsub.f32 1.0, %v1019
    %v1021 = vmul.f32 %v1018, %v1020
    %v1022 = vadd.f32 %v1018, %v1021
    %vm1023 = vweird.f32 %v1017
    %vm1024 = vweird.f32 %v1018
    %vm1025 = vmor %vm1023, %vm1024
    %v1026 = vsel %vm1025, %v1018, %v1022
    %v1027 = vand.u32 2147483647, %v1017
    %vm1028 = vcmp.eq.f32.partialorder %v1027, 8.507059e+37
    %v1029 = vand.u32 %v1017, 2147483648
    %v1030 = vor.u32 1.1754944e-38, %v1029
    %v1031 = vsel %vm1028, %v1030, %v1026
    %v1032 = vmul.f32 %v1014, %v1031
    %1033 = vrot.lane.b32.xlu0 %v813, 64
    %v1034 = vpop.permute.xlu0 %1033
    %v1037 = vsel %vm220, %v1032, 0
    %1039 = vmatpush.msra.mxu0 0.0
    %1040 = vmatpush.msra.mxu0 0.0
    %1041 = vmatpush.msra.mxu0 0.0
    %1042 = vmatpush.msra.mxu0 0.0
    %1043 = vmatpush.msra.mxu0 0.0
    %1044 = vmatpush.msra.mxu0 0.0
    %1045 = vmatpush.msra.mxu0 0.0
    %1046 = vmatpush.msra.mxu0 0.0
    %1047 = vmatpush.msra.mxu0 0.0
    %1048 = vmatpush.msra.mxu0 0.0
    %1049 = vmatpush.msra.mxu0 0.0
    %1050 = vmatpush.msra.mxu0 0.0
    %1051 = vmatpush.msra.mxu0 0.0
    %1052 = vmatpush.msra.mxu0 0.0
    %1053 = vmatpush.msra.mxu0 0.0
    %1054 = vmatpush.msra.mxu0 %v1034
    %1055 = vmatmul.f32.gmra.mxu0 %v1037
    %v1056 = vpop.f32.mrf.mxu0
    %v1057 = vadd.f32 0.0, %v1056
    %1058 = vdwg.mxu0
    %1059 = vst.msk [vmem:[#allocation2 + $0x8] sm:$0xff] %vm192, %v1057
    %1060 = vrot.lane.b32.xlu0 %v813, 112
    %v1061 = vpop.permute.xlu0 %1060
    %1062 = vrot.lane.b32.xlu0 %v813, 80
    %v1063 = vpop.permute.xlu0 %1062
    %v1064 = vsel %vm192, %v1061, 0
    %v1066 = vsel %vm192, %v1063, 0
    %1068 = vmatpush.xpose.msra.mxu0 0.0
    %1069 = vmatpush.xpose.msra.mxu0 0.0
    %1070 = vmatpush.xpose.msra.mxu0 0.0
    %1071 = vmatpush.xpose.msra.mxu0 0.0
    %1072 = vmatpush.xpose.msra.mxu0 0.0
    %1073 = vmatpush.xpose.msra.mxu0 0.0
    %1074 = vmatpush.xpose.msra.mxu0 0.0
    %1075 = vmatpush.xpose.msra.mxu0 0.0
    %1076 = vmatpush.xpose.msra.mxu0 0.0
    %1077 = vmatpush.xpose.msra.mxu0 0.0
    %1078 = vmatpush.xpose.msra.mxu0 0.0
    %1079 = vmatpush.xpose.msra.mxu0 0.0
    %1080 = vmatpush.xpose.msra.mxu0 0.0
    %1081 = vmatpush.xpose.msra.mxu0 0.0
    %1082 = vmatpush.xpose.msra.mxu0 0.0
    %1083 = vmatpush.xpose.msra.mxu0 %v1066
    %1084 = vmatmul.f32.gmra.mxu0 %v1064
    %v1085 = vpop.f32.mrf.mxu0
    %v1086 = vadd.f32 0.0, %v1085
    %1087 = vdwg.mxu0
    %v1088 = vmul.f32 %v1086, 0.25
    %v1089 = vadd.f32 %v1088, %v386
    %v1090 = vsel %vm220, %v1089, -inf
    %1091 = vmax.xlane.f32.xlu0 %v1090
    %v1092 = vpop.xlane.xlu0 %1091
    %v1093 = vsub.f32 %v1089, %v1092
    %v1094 = vmul.f32 %v1093, 1.442695
    %v1095 = vpow.pop %v1094
    %v1096 = vsel %vm220, %v1095, 0.0
    %1097 = vadd.xlane.f32.xlu0 %v1096
    %v1098 = vpop.xlane.xlu0 %1097
    %v1099 = vrcp.pop %v1098
    %v1100 = vmul.f32 %v1098, %v1099
    %v1101 = vsub.f32 1.0, %v1100
    %v1102 = vmul.f32 %v1099, %v1101
    %v1103 = vadd.f32 %v1099, %v1102
    %vm1104 = vweird.f32 %v1098
    %vm1105 = vweird.f32 %v1099
    %vm1106 = vmor %vm1104, %vm1105
    %v1107 = vsel %vm1106, %v1099, %v1103
    %v1108 = vand.u32 2147483647, %v1098
    %vm1109 = vcmp.eq.f32.partialorder %v1108, 8.507059e+37
    %v1110 = vand.u32 %v1098, 2147483648
    %v1111 = vor.u32 1.1754944e-38, %v1110
    %v1112 = vsel %vm1109, %v1111, %v1107
    %v1113 = vmul.f32 %v1095, %v1112
    %1114 = vrot.lane.b32.xlu0 %v813, 48
    %v1115 = vpop.permute.xlu0 %1114
    %v1118 = vsel %vm220, %v1113, 0
    %1120 = vmatpush.msra.mxu0 0.0
    %1121 = vmatpush.msra.mxu0 0.0
    %1122 = vmatpush.msra.mxu0 0.0
    %1123 = vmatpush.msra.mxu0 0.0
    %1124 = vmatpush.msra.mxu0 0.0
    %1125 = vmatpush.msra.mxu0 0.0
    %1126 = vmatpush.msra.mxu0 0.0
    %1127 = vmatpush.msra.mxu0 0.0
    %1128 = vmatpush.msra.mxu0 0.0
    %1129 = vmatpush.msra.mxu0 0.0
    %1130 = vmatpush.msra.mxu0 0.0
    %1131 = vmatpush.msra.mxu0 0.0
    %1132 = vmatpush.msra.mxu0 0.0
    %1133 = vmatpush.msra.mxu0 0.0
    %1134 = vmatpush.msra.mxu0 0.0
    %1135 = vmatpush.msra.mxu0 %v1115
    %1136 = vmatmul.f32.gmra.mxu0 %v1118
    %v1137 = vpop.f32.mrf.mxu0
    %v1138 = vadd.f32 0.0, %v1137
    %1139 = vdwg.mxu0
    %1141 = vrot.lane.b32.xlu0 %v1138, 16
    %v1142 = vpop.permute.xlu0 %1141
    %1144 = vst.msk [vmem:[#allocation2 + $0x8] sm:$0xff] %vm356, %v1142
    %v1145 = vld [vmem:[#allocation2] sm:$0xff]
    %v1146 = vld [vmem:[#allocation2 + $0x8] sm:$0xff]
    %s1147 = scalar_lea.vmem %s6, 32
    %v1148 = vld [vmem:[%s1147] sm:$0xff]
    %v1149 = vld [vmem:[%s1147 + $0x8] sm:$0xff]
    %v1150 = vld [vmem:[%s1147 + $0x10] sm:$0xff]
    %v1151 = vld [vmem:[%s1147 + $0x18] sm:$0xff]
    %s1152 = scalar_lea.vmem %s7, 1
    %v1153 = vld [vmem:[%s1152] sm:$0x1]
    %v1155 = vperm.slane %v1153, 0
    %v1158 = vsel %vm87, %v1145, 0
    %v1161 = vsel %vm87, %v1146, 0
    %1163 = vmatpush.msra.mxu0 0.0
    %1164 = vmatpush.msra.mxu0 0.0
    %1165 = vmatpush.msra.mxu0 0.0
    %1166 = vmatpush.msra.mxu0 0.0
    %1167 = vmatpush.msra.mxu0 0.0
    %1168 = vmatpush.msra.mxu0 0.0
    %1169 = vmatpush.msra.mxu0 0.0
    %1170 = vmatpush.msra.mxu0 0.0
    %1171 = vmatpush.msra.mxu0 0.0
    %1172 = vmatpush.msra.mxu0 0.0
    %1173 = vmatpush.msra.mxu0 0.0
    %1174 = vmatpush.msra.mxu0 0.0
    %1175 = vmatpush.msra.mxu0 %v1151
    %1176 = vmatpush.msra.mxu0 %v1150
    %1177 = vmatpush.msra.mxu0 %v1149
    %1178 = vmatpush.msra.mxu0 %v1148
    %1179 = vmatmul.f32.gmra.mxu0 %v1158
    %v1180 = vpop.f32.mrf.mxu0
    %v1181 = vadd.f32 %v1155, %v1180
    %1182 = vmatmul.f32.gmra.mxu0 %v1161
    %v1183 = vpop.f32.mrf.mxu0
    %v1184 = vadd.f32 %v1155, %v1183
    %1185 = vdwg.mxu0
    %v1186 = vadd.f32 %v774, %v1181
    %v1187 = vadd.f32 %v775, %v1184
    %s1188 = scalar_lea.vmem %s8, 1
    %v1189 = vld [vmem:[%s1188] sm:$0x1]
    %s1190 = scalar_lea.vmem %s9, 1
    %v1191 = vld [vmem:[%s1190] sm:$0x1]
    %v1192 = vsel %vm87, %v1186, 0.0
    %1193 = vadd.xlane.f32.xlu0 %v1192
    %v1194 = vpop.xlane.xlu0 %1193
    %v1195 = vsel %vm87, %v1187, 0.0
    %1196 = vadd.xlane.f32.xlu0 %v1195
    %v1197 = vpop.xlane.xlu0 %1196
    %v1198 = vmul.f32 %v1194, %v100
    %v1199 = vmul.f32 %v1197, %v100
    %v1200 = vsub.f32 %v1186, %v1198
    %v1201 = vsub.f32 %v1187, %v1199
    %v1202 = vmul.f32 %v1200, %v1200
    %v1203 = vmul.f32 %v1201, %v1201
    %v1204 = vsel %vm87, %v1202, 0.0
    %1205 = vadd.xlane.f32.xlu0 %v1204
    %v1206 = vpop.xlane.xlu0 %1205
    %v1207 = vsel %vm87, %v1203, 0.0
    %1208 = vadd.xlane.f32.xlu0 %v1207
    %v1209 = vpop.xlane.xlu0 %1208
    %v1210 = vmul.f32 %v1206, %v100
    %v1211 = vmul.f32 %v1209, %v100
    %v1212 = vadd.f32 %v1210, 1e-12
    %v1213 = vadd.f32 %v1211, 1e-12
    %v1214 = vrsqrt.pop %v1212
    %v1215 = vmul.f32 %v1214, %v1212
    %v1216 = vmul.f32 %v1215, %v1214
    %v1217 = vmul.f32 0.5, %v1216
    %v1218 = vsub.f32 1.5, %v1217
    %v1219 = vmul.f32 %v1214, %v1218
    %vm1220 = vweird.f32 %v1212
    %vm1221 = vweird.f32 %v1214
    %vm1222 = vmor %vm1220, %vm1221
    %v1223 = vsel %vm1222, %v1214, %v1219
    %v1224 = vrsqrt.pop %v1213
    %v1225 = vmul.f32 %v1224, %v1213
    %v1226 = vmul.f32 %v1225, %v1224
    %v1227 = vmul.f32 0.5, %v1226
    %v1228 = vsub.f32 1.5, %v1227
    %v1229 = vmul.f32 %v1224, %v1228
    %vm1230 = vweird.f32 %v1213
    %vm1231 = vweird.f32 %v1224
    %vm1232 = vmor %vm1230, %vm1231
    %v1233 = vsel %vm1232, %v1224, %v1229
    %v1234 = vmul.f32 %v1200, %v1223
    %v1235 = vmul.f32 %v1201, %v1233
    %v1237 = vperm.slane %v1189, 0
    %v1239 = vmul.f32 %v1234, %v1237
    %v1240 = vmul.f32 %v1235, %v1237
    %v1242 = vperm.slane %v1191, 0
    %v1244 = vadd.f32 %v1239, %v1242
    %v1245 = vadd.f32 %v1240, %v1242
    %s1246 = scalar_lea.vmem %s10, 32
    %v1247 = vld [vmem:[%s1246] sm:$0xff]
    %v1248 = vld [vmem:[%s1246 + $0x8] sm:$0xff]
    %v1249 = vld [vmem:[%s1246 + $0x10] sm:$0xff]
    %v1250 = vld [vmem:[%s1246 + $0x18] sm:$0xff]
    %s1251 = scalar_lea.vmem %s11, 1
    %v1252 = vld [vmem:[%s1251] sm:$0x1]
    %v1254 = vperm.slane %v1252, 0
    %v1257 = vsel %vm87, %v1244, 0
    %v1260 = vsel %vm87, %v1245, 0
    %1262 = vmatpush.msra.mxu0 0.0
    %1263 = vmatpush.msra.mxu0 0.0
    %1264 = vmatpush.msra.mxu0 0.0
    %1265 = vmatpush.msra.mxu0 0.0
    %1266 = vmatpush.msra.mxu0 0.0
    %1267 = vmatpush.msra.mxu0 0.0
    %1268 = vmatpush.msra.mxu0 0.0
    %1269 = vmatpush.msra.mxu0 0.0
    %1270 = vmatpush.msra.mxu0 0.0
    %1271 = vmatpush.msra.mxu0 0.0
    %1272 = vmatpush.msra.mxu0 0.0
    %1273 = vmatpush.msra.mxu0 0.0
    %1274 = vmatpush.msra.mxu0 %v1250
    %1275 = vmatpush.msra.mxu0 %v1249
    %1276 = vmatpush.msra.mxu0 %v1248
    %1277 = vmatpush.msra.mxu0 %v1247
    %1278 = vmatmul.f32.gmra.mxu0 %v1257
    %v1279 = vpop.f32.mrf.mxu0
    %v1280 = vadd.f32 %v1254, %v1279
    %1281 = vmatmul.f32.gmra.mxu0 %v1260
    %v1282 = vpop.f32.mrf.mxu0
    %v1283 = vadd.f32 %v1254, %v1282
    %1284 = vdwg.mxu0
    %v1285 = vmul.f32 %v1280, %v1280
    %v1286 = vmul.f32 %v1283, %v1283
    %v1287 = vmul.f32 %v1280, %v1285
    %v1288 = vmul.f32 %v1283, %v1286
    %v1289 = vmul.f32 %v1287, 0.044715
    %v1290 = vmul.f32 %v1288, 0.044715
    %v1291 = vadd.f32 %v1280, %v1289
    %v1292 = vadd.f32 %v1283, %v1290
    %v1293 = vmul.f32 %v1291, 0.7978846
    %v1294 = vmul.f32 %v1292, 0.7978846
    %v1295 = vtanh.pop %v1293
    %v1296 = vtanh.pop %v1294
    %v1297 = vadd.f32 %v1295, 1.0
    %v1298 = vadd.f32 %v1296, 1.0
    %v1299 = vmul.f32 %v1297, 0.5
    %v1300 = vmul.f32 %v1298, 0.5
    %v1301 = vmul.f32 %v1280, %v1299
    %v1302 = vmul.f32 %v1283, %v1300
    %s1303 = scalar_lea.vmem %s12, 64
    %v1304 = vld [vmem:[%s1303] sm:$0xff]
    %v1305 = vld [vmem:[%s1303 + $0x8] sm:$0xff]
    %v1306 = vld [vmem:[%s1303 + $0x10] sm:$0xff]
    %v1307 = vld [vmem:[%s1303 + $0x18] sm:$0xff]
    %v1308 = vld [vmem:[%s1303 + $0x20] sm:$0xff]
    %v1309 = vld [vmem:[%s1303 + $0x28] sm:$0xff]
    %v1310 = vld [vmem:[%s1303 + $0x30] sm:$0xff]
    %v1311 = vld [vmem:[%s1303 + $0x38] sm:$0xff]
    %s1312 = scalar_lea.vmem %s13, 1
    %v1313 = vld [vmem:[%s1312] sm:$0x1]
    %v1315 = vperm.slane %v1313, 0
    %v1318 = vsel %vm688, %v1301, 0
    %v1321 = vsel %vm688, %v1302, 0
    %1323 = vmatpush.msra.mxu0 0.0
    %1324 = vmatpush.msra.mxu0 0.0
    %1325 = vmatpush.msra.mxu0 0.0
    %1326 = vmatpush.msra.mxu0 0.0
    %1327 = vmatpush.msra.mxu0 0.0
    %1328 = vmatpush.msra.mxu0 0.0
    %1329 = vmatpush.msra.mxu0 0.0
    %1330 = vmatpush.msra.mxu0 0.0
    %1331 = vmatpush.msra.mxu0 %v1311
    %1332 = vmatpush.msra.mxu0 %v1310
    %1333 = vmatpush.msra.mxu0 %v1309
    %1334 = vmatpush.msra.mxu0 %v1308
    %1335 = vmatpush.msra.mxu0 %v1307
    %1336 = vmatpush.msra.mxu0 %v1306
    %1337 = vmatpush.msra.mxu0 %v1305
    %1338 = vmatpush.msra.mxu0 %v1304
    %1339 = vmatmul.f32.gmra.mxu0 %v1318
    %v1340 = vpop.f32.mrf.mxu0
    %v1341 = vadd.f32 %v1315, %v1340
    %1342 = vmatmul.f32.gmra.mxu0 %v1321
    %v1343 = vpop.f32.mrf.mxu0
    %v1344 = vadd.f32 %v1315, %v1343
    %1345 = vdwg.mxu0
    %v1346 = vadd.f32 %v1244, %v1341
    %v1347 = vadd.f32 %v1245, %v1344
    %s1348 = scalar_lea.vmem %s14, 1
    %v1349 = vld [vmem:[%s1348] sm:$0x1]
    %s1350 = scalar_lea.vmem %s15, 1
    %v1351 = vld [vmem:[%s1350] sm:$0x1]
    %v1352 = vsel %vm87, %v1346, 0.0
    %1353 = vadd.xlane.f32.xlu0 %v1352
    %v1354 = vpop.xlane.xlu0 %1353
    %v1355 = vsel %vm87, %v1347, 0.0
    %1356 = vadd.xlane.f32.xlu0 %v1355
    %v1357 = vpop.xlane.xlu0 %1356
    %v1358 = vmul.f32 %v1354, %v100
    %v1359 = vmul.f32 %v1357, %v100
    %v1360 = vsub.f32 %v1346, %v1358
    %v1361 = vsub.f32 %v1347, %v1359
    %v1362 = vmul.f32 %v1360, %v1360
    %v1363 = vmul.f32 %v1361, %v1361
    %v1364 = vsel %vm87, %v1362, 0.0
    %1365 = vadd.xlane.f32.xlu0 %v1364
    %v1366 = vpop.xlane.xlu0 %1365
    %v1367 = vsel %vm87, %v1363, 0.0
    %1368 = vadd.xlane.f32.xlu0 %v1367
    %v1369 = vpop.xlane.xlu0 %1368
    %v1370 = vmul.f32 %v1366, %v100
    %v1371 = vmul.f32 %v1369, %v100
    %v1372 = vadd.f32 %v1370, 1e-12
    %v1373 = vadd.f32 %v1371, 1e-12
    %v1374 = vrsqrt.pop %v1372
    %v1375 = vmul.f32 %v1374, %v1372
    %v1376 = vmul.f32 %v1375, %v1374
    %v1377 = vmul.f32 0.5, %v1376
    %v1378 = vsub.f32 1.5, %v1377
    %v1379 = vmul.f32 %v1374, %v1378
    %vm1380 = vweird.f32 %v1372
    %vm1381 = vweird.f32 %v1374
    %vm1382 = vmor %vm1380, %vm1381
    %v1383 = vsel %vm1382, %v1374, %v1379
    %v1384 = vrsqrt.pop %v1373
    %v1385 = vmul.f32 %v1384, %v1373
    %v1386 = vmul.f32 %v1385, %v1384
    %v1387 = vmul.f32 0.5, %v1386
    %v1388 = vsub.f32 1.5, %v1387
    %v1389 = vmul.f32 %v1384, %v1388
    %vm1390 = vweird.f32 %v1373
    %vm1391 = vweird.f32 %v1384
    %vm1392 = vmor %vm1390, %vm1391
    %v1393 = vsel %vm1392, %v1384, %v1389
    %v1394 = vmul.f32 %v1360, %v1383
    %v1395 = vmul.f32 %v1361, %v1393
    %v1397 = vperm.slane %v1349, 0
    %v1399 = vmul.f32 %v1394, %v1397
    %v1400 = vmul.f32 %v1395, %v1397
    %v1402 = vperm.slane %v1351, 0
    %v1404 = vadd.f32 %v1399, %v1402
    %v1405 = vadd.f32 %v1400, %v1402
    %v1406 = vld [vmem:[%s16] sm:$0xff]
    %v1407 = vld [vmem:[%s16 + $0x8] sm:$0xff]
    %v1408 = vld [vmem:[%s16 + $0x10] sm:$0xff]
    %v1409 = vld [vmem:[%s16 + $0x18] sm:$0xff]
    %v1410 = vld [vmem:[%s16 + $0x20] sm:$0xff]
    %v1411 = vld [vmem:[%s16 + $0x28] sm:$0xff]
    %v1412 = vld [vmem:[%s16 + $0x30] sm:$0xff]
    %v1413 = vld [vmem:[%s16 + $0x38] sm:$0xff]
    %v1414 = vld [vmem:[%s16 + $0x40] sm:$0xff]
    %v1415 = vld [vmem:[%s16 + $0x48] sm:$0xff]
    %v1416 = vld [vmem:[%s16 + $0x50] sm:$0xff]
    %v1417 = vld [vmem:[%s16 + $0x58] sm:$0xff]
    %v1418 = vld [vmem:[%s16 + $0x60] sm:$0xff]
    %v1419 = vld [vmem:[%s16 + $0x68] sm:$0xff]
    %v1420 = vld [vmem:[%s16 + $0x70] sm:$0xff]
    %v1421 = vld [vmem:[%s16 + $0x78] sm:$0xff]
    %v1422 = vld [vmem:[%s17] sm:$0x1]
    %v1424 = vperm.slane %v1422, 0
    %v1427 = vsel %vm87, %v1404, 0
    %v1430 = vsel %vm87, %v1405, 0
    %v1433 = vsel %vm87, %v1406, 0
    %v1436 = vsel %vm87, %v1407, 0
    %v1439 = vsel %vm87, %v1408, 0
    %v1442 = vsel %vm87, %v1409, 0
    %v1445 = vsel %vm87, %v1410, 0
    %v1448 = vsel %vm87, %v1411, 0
    %v1451 = vsel %vm87, %v1412, 0
    %v1454 = vsel %vm87, %v1413, 0
    %v1457 = vsel %vm87, %v1414, 0
    %v1460 = vsel %vm87, %v1415, 0
    %v1463 = vsel %vm87, %v1416, 0
    %v1466 = vsel %vm87, %v1417, 0
    %v1469 = vsel %vm87, %v1418, 0
    %v1472 = vsel %vm87, %v1419, 0
    %v1475 = vsel %vm87, %v1420, 0
    %v1478 = vsel %vm87, %v1421, 0
    %1480 = vmatpush.xpose.msra.mxu0 %v1478
    %1481 = vmatpush.xpose.msra.mxu0 %v1475
    %1482 = vmatpush.xpose.msra.mxu0 %v1472
    %1483 = vmatpush.xpose.msra.mxu0 %v1469
    %1484 = vmatpush.xpose.msra.mxu0 %v1466
    %1485 = vmatpush.xpose.msra.mxu0 %v1463
    %1486 = vmatpush.xpose.msra.mxu0 %v1460
    %1487 = vmatpush.xpose.msra.mxu0 %v1457
    %1488 = vmatpush.xpose.msra.mxu0 %v1454
    %1489 = vmatpush.xpose.msra.mxu0 %v1451
    %1490 = vmatpush.xpose.msra.mxu0 %v1448
    %1491 = vmatpush.xpose.msra.mxu0 %v1445
    %1492 = vmatpush.xpose.msra.mxu0 %v1442
    %1493 = vmatpush.xpose.msra.mxu0 %v1439
    %1494 = vmatpush.xpose.msra.mxu0 %v1436
    %1495 = vmatpush.xpose.msra.mxu0 %v1433
    %1496 = vmatmul.f32.gmra.mxu0 %v1427
    %v1497 = vpop.f32.mrf.mxu0
    %v1498 = vadd.f32 %v1424, %v1497
    %1499 = vmatmul.f32.gmra.mxu0 %v1430
    %v1500 = vpop.f32.mrf.mxu0
    %v1501 = vadd.f32 %v1424, %v1500
    %1502 = vdwg.mxu0
    %1503 = vmax.xlane.f32.xlu0 %v1498
    %v1504 = vpop.xlane.xlu0 %1503
    %1505 = vmax.xlane.f32.xlu0 %v1501
    %v1506 = vpop.xlane.xlu0 %1505
    %v1507 = vsub.f32 %v1498, %v1504
    %v1508 = vsub.f32 %v1501, %v1506
    %v1509 = vmul.f32 %v1507, 1.442695
    %v1510 = vpow.pop %v1509
    %v1511 = vmul.f32 %v1508, 1.442695
    %v1512 = vpow.pop %v1511
    %1513 = vadd.xlane.f32.xlu0 %v1510
    %v1514 = vpop.xlane.xlu0 %1513
    %1515 = vadd.xlane.f32.xlu0 %v1512
    %v1516 = vpop.xlane.xlu0 %1515
    %v1517 = vlog2.pop %v1514
    %v1518 = vmul.f32 %v1517, 0.6931472
    %v1519 = vlog2.pop %v1516
    %v1520 = vmul.f32 %v1519, 0.6931472
    %v1521 = vsub.f32 %v1507, %v1518
    %v1522 = vsub.f32 %v1508, %v1520
    %1523 = vst [vmem:[#allocation4] sm:$0xff] %v1521
    %1524 = vst [vmem:[#allocation4 + $0x8] sm:$0xff] %v1522
    %v1525 = vld [vmem:[%s22] sm:$0x1]
    %v1526 = vld [vmem:[#allocation3] sm:$0x1]
    %v1527 = vld [vmem:[%s18] sm:$0xff]
    %v1528 = vld [vmem:[%s18 + $0x8] sm:$0xff]
    %v1529 = vld [vmem:[%s18 + $0x10] sm:$0xff]
    %v1530 = vld [vmem:[%s18 + $0x18] sm:$0xff]
    %v1531 = vld [vmem:[%s19] sm:$0x1]
    %v1533 = vperm.slane %v1531, 0
    %1535 = vmatpush.msra.mxu0 0.0
    %1536 = vmatpush.msra.mxu0 0.0
    %1537 = vmatpush.msra.mxu0 0.0
    %1538 = vmatpush.msra.mxu0 0.0
    %1539 = vmatpush.msra.mxu0 0.0
    %1540 = vmatpush.msra.mxu0 0.0
    %1541 = vmatpush.msra.mxu0 0.0
    %1542 = vmatpush.msra.mxu0 0.0
    %1543 = vmatpush.msra.mxu0 0.0
    %1544 = vmatpush.msra.mxu0 0.0
    %1545 = vmatpush.msra.mxu0 0.0
    %1546 = vmatpush.msra.mxu0 0.0
    %1547 = vmatpush.msra.mxu0 %v1530
    %1548 = vmatpush.msra.mxu0 %v1529
    %1549 = vmatpush.msra.mxu0 %v1528
    %1550 = vmatpush.msra.mxu0 %v1527
    %1551 = vmatmul.f32.gmra.mxu0 %v1427
    %v1552 = vpop.f32.mrf.mxu0
    %v1553 = vadd.f32 %v1533, %v1552
    %1554 = vmatmul.f32.gmra.mxu0 %v1430
    %v1555 = vpop.f32.mrf.mxu0
    %v1556 = vadd.f32 %v1533, %v1555
    %1557 = vdwg.mxu0
    %v1558 = vtanh.pop %v1553
    %v1559 = vtanh.pop %v1556
    %v1561 = vperm.slane %v1525, 0
    %v1563 = vmul.f32 %v1558, %v1561
    %v1564 = vmul.f32 %v1559, %v1561
    %v1565 = vsel %vm87, %v1563, 0.0
    %1566 = vadd.xlane.f32.xlu0 %v1565
    %v1567 = vpop.xlane.xlu0 %1566
    %v1568 = vsel %vm87, %v1564, 0.0
    %1569 = vadd.xlane.f32.xlu0 %v1568
    %v1570 = vpop.xlane.xlu0 %1569
    %v1572 = vperm.slane %v1526, 0
    %v1574 = vadd.f32 %v1567, %v1572
    %v1575 = vadd.f32 %v1570, %v1572
    %v1576 = vxor.u32 %v1574, 2147483648
    %v1577 = vxor.u32 %v1575, 2147483648
    %v1578 = vmul.f32 %v1576, 1.442695
    %v1579 = vpow.pop %v1578
    %v1580 = vmul.f32 %v1577, 1.442695
    %v1581 = vpow.pop %v1580
    %v1582 = vadd.f32 %v1579, 1.0
    %v1583 = vadd.f32 %v1581, 1.0
    %v1584 = vrcp.pop %v1582
    %v1585 = vmul.f32 %v1582, %v1584
    %v1586 = vsub.f32 1.0, %v1585
    %v1587 = vmul.f32 %v1584, %v1586
    %v1588 = vadd.f32 %v1584, %v1587
    %vm1589 = vweird.f32 %v1582
    %vm1590 = vweird.f32 %v1584
    %vm1591 = vmor %vm1589, %vm1590
    %v1592 = vsel %vm1591, %v1584, %v1588
    %v1593 = vand.u32 2147483647, %v1582
    %vm1594 = vcmp.eq.f32.partialorder %v1593, 8.507059e+37
    %v1595 = vand.u32 %v1582, 2147483648
    %v1596 = vor.u32 1.1754944e-38, %v1595
    %v1597 = vsel %vm1594, %v1596, %v1592
    %v1598 = vmul.f32 1.0, %v1597
    %v1599 = vrcp.pop %v1583
    %v1600 = vmul.f32 %v1583, %v1599
    %v1601 = vsub.f32 1.0, %v1600
    %v1602 = vmul.f32 %v1599, %v1601
    %v1603 = vadd.f32 %v1599, %v1602
    %vm1604 = vweird.f32 %v1583
    %vm1605 = vweird.f32 %v1599
    %vm1606 = vmor %vm1604, %vm1605
    %v1607 = vsel %vm1606, %v1599, %v1603
    %v1608 = vand.u32 2147483647, %v1583
    %vm1609 = vcmp.eq.f32.partialorder %v1608, 8.507059e+37
    %v1610 = vand.u32 %v1583, 2147483648
    %v1611 = vor.u32 1.1754944e-38, %v1610
    %v1612 = vsel %vm1609, %v1611, %v1607
    %v1613 = vmul.f32 1.0, %v1612
    %vm1614 = vcmask 0
    %1615 = vst.msk [vmem:[%s25] sm:$0x1] %vm1614, %v1598
    %1616 = vst.msk [vmem:[%s25 + $0x1] sm:$0x1] %vm1614, %v1613
    %v1617 = vld [vmem:[%s20] sm:$0xff]
    %v1618 = vld [vmem:[%s20 + $0x8] sm:$0xff]
    %v1619 = vld [vmem:[%s20 + $0x10] sm:$0xff]
    %v1620 = vld [vmem:[%s20 + $0x18] sm:$0xff]
    %v1621 = vld [vmem:[%s21] sm:$0x1]
    %v1623 = vperm.slane %v1621, 0
    %1625 = vmatpush.msra.mxu0 0.0
    %1626 = vmatpush.msra.mxu0 0.0
    %1627 = vmatpush.msra.mxu0 0.0
    %1628 = vmatpush.msra.mxu0 0.0
    %1629 = vmatpush.msra.mxu0 0.0
    %1630 = vmatpush.msra.mxu0 0.0
    %1631 = vmatpush.msra.mxu0 0.0
    %1632 = vmatpush.msra.mxu0 0.0
    %1633 = vmatpush.msra.mxu0 0.0
    %1634 = vmatpush.msra.mxu0 0.0
    %1635 = vmatpush.msra.mxu0 0.0
    %1636 = vmatpush.msra.mxu0 0.0
    %1637 = vmatpush.msra.mxu0 %v1620
    %1638 = vmatpush.msra.mxu0 %v1619
    %1639 = vmatpush.msra.mxu0 %v1618
    %1640 = vmatpush.msra.mxu0 %v1617
    %1641 = vmatmul.f32.gmra.mxu0 %v1427
    %v1642 = vpop.f32.mrf.mxu0
    %v1643 = vadd.f32 %v1623, %v1642
    %1644 = vmatmul.f32.gmra.mxu0 %v1430
    %v1645 = vpop.f32.mrf.mxu0
    %v1646 = vadd.f32 %v1623, %v1645
    %1647 = vdwg.mxu0
    %v1648 = vtanh.pop %v1643
    %v1649 = vtanh.pop %v1646
    %v1650 = vmul.f32 %v1648, %v1561
    %v1651 = vmul.f32 %v1649, %v1561
    %v1652 = vsel %vm87, %v1650, 0.0
    %1653 = vadd.xlane.f32.xlu0 %v1652
    %v1654 = vpop.xlane.xlu0 %1653
    %v1655 = vsel %vm87, %v1651, 0.0
    %1656 = vadd.xlane.f32.xlu0 %v1655
    %v1657 = vpop.xlane.xlu0 %1656
    %v1658 = vadd.f32 %v1654, %v1572
    %v1659 = vadd.f32 %v1657, %v1572
    %vm1660 = vcmask 7168
    %1661 = vst.msk [vmem:[%s26] sm:$0xff] %vm1660, %v1658
    %1662 = vst.msk [vmem:[%s26 + $0x8] sm:$0xff] %vm1660, %v1659
    // Predicated region
    $region98: #{bert_csc_forward.1} parent=1 // pred_check
      _
    $region99: #{bert_csc_forward.1} parent=1 // pred_check_branch
      %1664 = sbr.rel (0) target = $region101
    $region100: #{bert_csc_forward.1} parent=1 // pred_region
      %1666 = vsyncadd [#allocation5], 0
      %s1667 = sshll.u32 [#allocation4], 4
      %s1668 = int_to_ptr.vmem [resolvable:$true] %s1667
      %s1669 = sshll.u32 %s24, 4
      %s1670 = int_to_ptr.hbm [resolvable:$true] %s1669
      %1675 = dma.vmem_to_hbm [thread:$0]  %s1668, 256, %s1670, [#allocation5], 128, 128, 8
    $region101: #{bert_csc_forward.1} parent=1 // pred_fallthru
      _
    // Predicated region
    $region102: #{bert_csc_forward.1} parent=1 // pred_check
      _
    $region103: #{bert_csc_forward.1} parent=1 // pred_check_branch
      %1677 = sbr.rel (0) target = $region105
    $region104: #{bert_csc_forward.1} parent=1 // pred_region
      _
    $region105: #{bert_csc_forward.1} parent=1 // pred_fallthru
      _
    // Predicated region
    $region106: #{bert_csc_forward.1} parent=1 // pred_check
      _
    $region107: #{bert_csc_forward.1} parent=1 // pred_check_branch
      %1679 = sbr.rel (0) target = $region109
    $region108: #{bert_csc_forward.1} parent=1 // pred_region
      _
    $region109: #{bert_csc_forward.1} parent=1 // pred_fallthru
      _
    // Predicated region
    $region110: #{bert_csc_forward.1} parent=1 // pred_check
      _
    $region111: #{bert_csc_forward.1} parent=1 // pred_check_branch
      %1681 = sbr.rel (0) target = $region113
    $region112: #{bert_csc_forward.1} parent=1 // pred_region
      %1683 = dma.done [#allocation5], 256
    $region113: #{bert_csc_forward.1} parent=1 // pred_fallthru
      _
    // Predicated region
    $region114: #{bert_csc_forward.1} parent=1 // pred_check
      _
    $region115: #{bert_csc_forward.1} parent=1 // pred_check_branch
      %1685 = sbr.rel (0) target = $region117
    $region116: #{bert_csc_forward.1} parent=1 // pred_region
      _
    $region117: #{bert_csc_forward.1} parent=1 // pred_fallthru
      _
    // Predicated region
    $region118: #{bert_csc_forward.1} parent=1 // pred_check
      _
    $region119: #{bert_csc_forward.1} parent=1 // pred_check_branch
      %1687 = sbr.rel (0) target = $region121
    $region120: #{bert_csc_forward.1} parent=1 // pred_region
      _
    $region121: #{bert_csc_forward.1} parent=1 // pred_fallthru
      _
    %1688 = vsyncpa [#allocation5], 1

</llo_original>
